<compile_context>
chip_gen: v6e
topology: v6e:2x2x1
jax: 0.10.0
libtpu: 0.0.40
codegen_flags: <defaults>
</compile_context>

<pallas_src>
import functools

import jax
import jax.numpy as jnp
from jax.experimental import pallas as pl
from jax.experimental.pallas import tpu as pltpu


# ----------------------------------------------------------------------------
# Fused kernel: per batch element, x is (N, P*C) in "patch-major" layout.
#   qkv flat layout (per torch's reshape) : flat216[n, j] with j = s*72+h*18+d
#   q_h/k_h/v_h (N, D=18)                 : x @ W_big[s, h]   (W_big block-diag)
#   head merge + proj                     : sum_h o_h @ M[h] + bias72
# ----------------------------------------------------------------------------
def _fused_patch_attention_kernel(x_ref, w_ref, m_ref, b_ref, o_ref, *,
                                  num_heads, head_d, scale):
    x = x_ref[0]                                    # (N, P*C)
    n_tok, pc = x.shape
    acc = jnp.zeros((n_tok, pc), dtype=jnp.float32)

    # Static 4-iteration unroll: all heads' MXU pushes pipeline in one step.
    for h in range(num_heads):
        q = jnp.dot(x, w_ref[0, h], preferred_element_type=jnp.float32)   # (N, D)
        k = jnp.dot(x, w_ref[1, h], preferred_element_type=jnp.float32)   # (N, D)
        v = jnp.dot(x, w_ref[2, h], preferred_element_type=jnp.float32)   # (N, D)

        s = jax.lax.dot_general(q, k, (((1,), (1,)), ((), ())),
                                preferred_element_type=jnp.float32) * scale
        s = s - jnp.max(s, axis=-1, keepdims=True)
        p = jnp.exp(s)
        p = p * pl.reciprocal(jnp.sum(p, axis=-1, keepdims=True), approx=True)

        o_h = jnp.dot(p, v, preferred_element_type=jnp.float32)           # (N, D)
        # head-merge (torch's reinterpretation == plain concat over heads)
        # fused with the output projection: o_h @ M[h] is (N, P*C).
        acc = acc + jnp.dot(o_h, m_ref[h], preferred_element_type=jnp.float32)

    o_ref[0] = (acc + b_ref[...]).astype(o_ref.dtype)


# ----------------------------------------------------------------------------
# Wrapper
# ----------------------------------------------------------------------------
def attention_forward_pallas(x, w_qkv, w_proj, b_proj, *,
                             num_heads=4, patch_size=3, patch_grid=3):
    B, H, W, C = x.shape
    N = patch_grid * patch_grid
    P = patch_size * patch_size
    hd = C // num_heads
    D = P * hd                      # per-head "token" feature size
    PC = P * C
    scale = float((hd * P) ** -0.5)

    # --- spatial patch re-blocking (mirror of torch view/permute), one copy ---
    xv = x.reshape(B, patch_grid, patch_size, patch_grid, patch_size, C)
    x72 = jnp.transpose(xv, (0, 1, 3, 2, 4, 5)).reshape(B, N, PC)

    # --- constant matrices folding the torch reshape semantics (built on host-
    #     side JAX from the tiny weights; negligible cost) ---
    eye_p = jnp.eye(P, dtype=x.dtype)
    # block-diag of P copies of w_qkv: (P*C, P*3C); its column j is exactly the
    # flat qkv index j = s*PC + h*D + d used by the torch reshape.
    bd_qkv = jnp.einsum("pq,cd->pcqd", eye_p, w_qkv).reshape(PC, 3 * PC)
    w_stack = bd_qkv.reshape(PC, 3, num_heads, D).transpose(1, 2, 0, 3)  # (3,H,PC,D)
    # block-diag of P copies of w_proj: (P*C, P*C); rows h*D:(h+1)*D are the
    # merge+projection matrix for head h.
    bd_proj = jnp.einsum("pq,cd->pcqd", eye_p, w_proj).reshape(PC, PC)
    m_stack = bd_proj.reshape(num_heads, D, PC)                           # (H,D,PC)
    b72 = jnp.tile(b_proj.reshape(1, C), (1, P))                          # (1,PC)

    kern = functools.partial(_fused_patch_attention_kernel,
                             num_heads=num_heads, head_d=D, scale=scale)

    y72 = pl.pallas_call(
        kern,
        out_shape=jax.ShapeDtypeStruct((B, N, PC), x.dtype),
        grid=(B,),
        in_specs=[
            pl.BlockSpec((1, N, PC), lambda b: (b, 0, 0)),
            pl.BlockSpec((3, num_heads, PC, D), lambda b: (0, 0, 0, 0)),
            pl.BlockSpec((num_heads, D, PC), lambda b: (0, 0, 0)),
            pl.BlockSpec((1, PC), lambda b: (0, 0)),
        ],
        out_specs=pl.BlockSpec((1, N, PC), lambda b: (b, 0, 0)),
        compiler_params=pltpu.CompilerParams(dimension_semantics=("parallel",)),
    )(x72, w_stack, m_stack, b72)

    # --- inverse spatial re-blocking (mirror of torch x_back permute) ---
    yb = y72.reshape(B, patch_grid, patch_grid, patch_size, patch_size, C)
    return jnp.transpose(yb, (0, 1, 3, 2, 4, 5)).reshape(B, H, W, C)


# ----------------------------------------------------------------------------
# Pure-JAX reference: step-by-step mirror of the torch module's forward
# (independent of the kernel's constant-matrix formulation).
# ----------------------------------------------------------------------------
def attention_forward_ref(x, w_qkv, w_proj, b_proj, *,
                          num_heads=4, patch_size=3, patch_grid=3):
    B, H, W, C = x.shape
    N = patch_grid * patch_grid
    P = patch_size * patch_size
    hd = C // num_heads
    scale = (hd * P) ** -0.5

    xv = x.reshape(B, patch_grid, patch_size, patch_grid, patch_size, C)
    x_fc = jnp.transpose(xv, (0, 1, 3, 2, 4, 5)).reshape(B, N, P, C)

    qkv = x_fc @ w_qkv                                         # (B,N,P,3C)
    qkv = qkv.reshape(B, N, 3, num_heads, P, hd)
    qkv = jnp.transpose(qkv, (2, 0, 3, 1, 4, 5)).reshape(3, B, num_heads, N, P * hd)
    q, k, v = qkv[0], qkv[1], qkv[2]

    attn = jnp.einsum("bhnd,bhmd->bhnm", q, k) * scale
    attn = jax.nn.softmax(attn, axis=-1)
    o = jnp.einsum("bhnm,bhmd->bhnd", attn, v)                 # (B,H,N,D)

    o = jnp.transpose(o, (0, 2, 1, 3)).reshape(B, N, P, hd, num_heads)
    o = o.reshape(B, N, P, C)
    y = o @ w_proj + b_proj                                    # (B,N,P,C)

    yb = y.reshape(B, patch_grid, patch_grid, patch_size, patch_size, C)
    return jnp.transpose(yb, (0, 1, 3, 2, 4, 5)).reshape(B, H, W, C)


# ----------------------------------------------------------------------------
if __name__ == "__main__":
    # Attention(dim=8, num_heads=4, patch_size=3, patch_grid=3)
    B, dim, num_heads, patch_size, patch_grid = 2, 8, 4, 3, 3
    H = W = patch_size * patch_grid          # 9

    key = jax.random.PRNGKey(0)
    kx, kq, kp, kb = jax.random.split(key, 4)
    x = jax.random.normal(kx, (B, H, W, dim), jnp.float32)
    w_qkv = jax.random.normal(kq, (dim, 3 * dim), jnp.float32) * 0.1   # bias=False
    w_proj = jax.random.normal(kp, (dim, dim), jnp.float32) * 0.1
    b_proj = jax.random.normal(kb, (dim,), jnp.float32) * 0.1

    fwd = jax.jit(functools.partial(attention_forward_pallas,
                                    num_heads=num_heads,
                                    patch_size=patch_size,
                                    patch_grid=patch_grid))
    out = jax.block_until_ready(fwd(x, w_qkv, w_proj, b_proj))

    ref = jax.block_until_ready(
        attention_forward_ref(x, w_qkv, w_proj, b_proj,
                              num_heads=num_heads, patch_size=patch_size,
                              patch_grid=patch_grid))

    assert out.shape == (B, H, W, dim), out.shape
    max_err = float(jnp.max(jnp.abs(out - ref)))
    # tolerance allows for the approximate EUP reciprocal in the softmax denom
    assert max_err < 1e-3, max_err

    print("KERNEL_OK")
</pallas_src>

<mosaic_0001>
module attributes {stable_mosaic.version = 11 : i64} {
  func.func @_fused_patch_attention_kernel(%arg0: i32, %arg1: memref<1x9x72xf32, #tpu.memory_space<vmem>>, %arg2: memref<3x4x72x18xf32, #tpu.memory_space<vmem>>, %arg3: memref<4x18x72xf32, #tpu.memory_space<vmem>>, %arg4: memref<1x72xf32, #tpu.memory_space<vmem>>, %arg5: memref<1x9x72xf32, #tpu.memory_space<vmem>>) attributes {dimension_semantics = [#tpu.dimension_semantics<parallel>], iteration_bounds = array<i64: 2>, scalar_prefetch = 0 : i64, scratch_operands = 0 : i64, tpu.core_type = #tpu.core_type<tc>, window_params = [{transform_indices = @transform_0, window_bounds = array<i64: 1, 9, 72>}, {pipeline_mode = #tpu.pipeline_mode<synchronous>, transform_indices = @transform_1, window_bounds = array<i64: 3, 4, 72, 18>}, {pipeline_mode = #tpu.pipeline_mode<synchronous>, transform_indices = @transform_2, window_bounds = array<i64: 4, 18, 72>}, {pipeline_mode = #tpu.pipeline_mode<synchronous>, transform_indices = @transform_3, window_bounds = array<i64: 1, 72>}, {transform_indices = @transform_4, window_bounds = array<i64: 1, 9, 72>}]} {
    %c0 = arith.constant 0 : index
    %c0_0 = arith.constant 0 : index
    %c0_1 = arith.constant 0 : index
    %0 = vector.load %arg1[%c0, %c0_0, %c0_1] : memref<1x9x72xf32, #tpu.memory_space<vmem>>, vector<1x9x72xf32>
    %1 = vector.shape_cast %0 : vector<1x9x72xf32> to vector<9x72xf32>
    %cst = arith.constant 0.000000e+00 : f32
    %2 = vector.broadcast %cst : f32 to vector<9x72xf32>
    %c0_2 = arith.constant 0 : index
    %c0_3 = arith.constant 0 : index
    %c0_4 = arith.constant 0 : index
    %c0_5 = arith.constant 0 : index
    %3 = vector.load %arg2[%c0_2, %c0_3, %c0_4, %c0_5] : memref<3x4x72x18xf32, #tpu.memory_space<vmem>>, vector<1x1x72x18xf32>
    %4 = vector.shape_cast %3 : vector<1x1x72x18xf32> to vector<72x18xf32>
    %cst_6 = arith.constant dense<0.000000e+00> : vector<9x18xf32>
    %5 = tpu.matmul %1, %4, %cst_6 {dimension_numbers = #tpu.dot_dimension_numbers<[1], [0], [0], [1], [0, 0, 1, 1], [], []>} : vector<9x72xf32>, vector<72x18xf32>, vector<9x18xf32> -> vector<9x18xf32>
    %c1 = arith.constant 1 : index
    %c0_7 = arith.constant 0 : index
    %c0_8 = arith.constant 0 : index
    %c0_9 = arith.constant 0 : index
    %6 = vector.load %arg2[%c1, %c0_7, %c0_8, %c0_9] : memref<3x4x72x18xf32, #tpu.memory_space<vmem>>, vector<1x1x72x18xf32>
    %7 = vector.shape_cast %6 : vector<1x1x72x18xf32> to vector<72x18xf32>
    %cst_10 = arith.constant dense<0.000000e+00> : vector<9x18xf32>
    %8 = tpu.matmul %1, %7, %cst_10 {dimension_numbers = #tpu.dot_dimension_numbers<[1], [0], [0], [1], [0, 0, 1, 1], [], []>} : vector<9x72xf32>, vector<72x18xf32>, vector<9x18xf32> -> vector<9x18xf32>
    %c2 = arith.constant 2 : index
    %c0_11 = arith.constant 0 : index
    %c0_12 = arith.constant 0 : index
    %c0_13 = arith.constant 0 : index
    %9 = vector.load %arg2[%c2, %c0_11, %c0_12, %c0_13] : memref<3x4x72x18xf32, #tpu.memory_space<vmem>>, vector<1x1x72x18xf32>
    %10 = vector.shape_cast %9 : vector<1x1x72x18xf32> to vector<72x18xf32>
    %cst_14 = arith.constant dense<0.000000e+00> : vector<9x18xf32>
    %11 = tpu.matmul %1, %10, %cst_14 {dimension_numbers = #tpu.dot_dimension_numbers<[1], [0], [0], [1], [0, 0, 1, 1], [], []>} : vector<9x72xf32>, vector<72x18xf32>, vector<9x18xf32> -> vector<9x18xf32>
    %cst_15 = arith.constant dense<0.000000e+00> : vector<9x9xf32>
    %12 = tpu.matmul %5, %8, %cst_15 {dimension_numbers = #tpu.dot_dimension_numbers<[1], [1], [0], [0], [0, 0, 1, 0], [], []>} : vector<9x18xf32>, vector<9x18xf32>, vector<9x9xf32> -> vector<9x9xf32>
    %cst_16 = arith.constant 0.235702261 : f32
    %13 = vector.broadcast %cst_16 : f32 to vector<9x9xf32>
    %14 = arith.mulf %12, %13 : vector<9x9xf32>
    %cst_17 = arith.constant dense<0xFF800000> : vector<9xf32>
    %15 = vector.multi_reduction <maximumf>, %14, %cst_17 [1] : vector<9x9xf32> to vector<9xf32>
    %16 = vector.shape_cast %15 : vector<9xf32> to vector<9x1xf32>
    %17 = vector.broadcast %16 : vector<9x1xf32> to vector<9x9xf32>
    %18 = arith.subf %14, %17 : vector<9x9xf32>
    %19 = math.exp %18 : vector<9x9xf32>
    %cst_18 = arith.constant dense<0.000000e+00> : vector<9xf32>
    %20 = vector.multi_reduction <add>, %19, %cst_18 [1] : vector<9x9xf32> to vector<9xf32>
    %21 = vector.shape_cast %20 : vector<9xf32> to vector<9x1xf32>
    %22 = tpu.reciprocal %21 {approx = true} : vector<9x1xf32> -> vector<9x1xf32>
    %23 = vector.broadcast %22 : vector<9x1xf32> to vector<9x9xf32>
    %24 = arith.mulf %19, %23 : vector<9x9xf32>
    %cst_19 = arith.constant dense<0.000000e+00> : vector<9x18xf32>
    %25 = tpu.matmul %24, %11, %cst_19 {dimension_numbers = #tpu.dot_dimension_numbers<[1], [0], [0], [1], [0, 0, 1, 1], [], []>} : vector<9x9xf32>, vector<9x18xf32>, vector<9x18xf32> -> vector<9x18xf32>
    %c0_20 = arith.constant 0 : index
    %c0_21 = arith.constant 0 : index
    %c0_22 = arith.constant 0 : index
    %26 = vector.load %arg3[%c0_20, %c0_21, %c0_22] : memref<4x18x72xf32, #tpu.memory_space<vmem>>, vector<1x18x72xf32>
    %27 = vector.shape_cast %26 : vector<1x18x72xf32> to vector<18x72xf32>
    %cst_23 = arith.constant dense<0.000000e+00> : vector<9x72xf32>
    %28 = tpu.matmul %25, %27, %cst_23 {dimension_numbers = #tpu.dot_dimension_numbers<[1], [0], [0], [1], [0, 0, 1, 1], [], []>} : vector<9x18xf32>, vector<18x72xf32>, vector<9x72xf32> -> vector<9x72xf32>
    %29 = arith.addf %2, %28 : vector<9x72xf32>
    %c0_24 = arith.constant 0 : index
    %c1_25 = arith.constant 1 : index
    %c0_26 = arith.constant 0 : index
    %c0_27 = arith.constant 0 : index
    %30 = vector.load %arg2[%c0_24, %c1_25, %c0_26, %c0_27] : memref<3x4x72x18xf32, #tpu.memory_space<vmem>>, vector<1x1x72x18xf32>
    %31 = vector.shape_cast %30 : vector<1x1x72x18xf32> to vector<72x18xf32>
    %cst_28 = arith.constant dense<0.000000e+00> : vector<9x18xf32>
    %32 = tpu.matmul %1, %31, %cst_28 {dimension_numbers = #tpu.dot_dimension_numbers<[1], [0], [0], [1], [0, 0, 1, 1], [], []>} : vector<9x72xf32>, vector<72x18xf32>, vector<9x18xf32> -> vector<9x18xf32>
    %c1_29 = arith.constant 1 : index
    %c1_30 = arith.constant 1 : index
    %c0_31 = arith.constant 0 : index
    %c0_32 = arith.constant 0 : index
    %33 = vector.load %arg2[%c1_29, %c1_30, %c0_31, %c0_32] : memref<3x4x72x18xf32, #tpu.memory_space<vmem>>, vector<1x1x72x18xf32>
    %34 = vector.shape_cast %33 : vector<1x1x72x18xf32> to vector<72x18xf32>
    %cst_33 = arith.constant dense<0.000000e+00> : vector<9x18xf32>
    %35 = tpu.matmul %1, %34, %cst_33 {dimension_numbers = #tpu.dot_dimension_numbers<[1], [0], [0], [1], [0, 0, 1, 1], [], []>} : vector<9x72xf32>, vector<72x18xf32>, vector<9x18xf32> -> vector<9x18xf32>
    %c2_34 = arith.constant 2 : index
    %c1_35 = arith.constant 1 : index
    %c0_36 = arith.constant 0 : index
    %c0_37 = arith.constant 0 : index
    %36 = vector.load %arg2[%c2_34, %c1_35, %c0_36, %c0_37] : memref<3x4x72x18xf32, #tpu.memory_space<vmem>>, vector<1x1x72x18xf32>
    %37 = vector.shape_cast %36 : vector<1x1x72x18xf32> to vector<72x18xf32>
    %cst_38 = arith.constant dense<0.000000e+00> : vector<9x18xf32>
    %38 = tpu.matmul %1, %37, %cst_38 {dimension_numbers = #tpu.dot_dimension_numbers<[1], [0], [0], [1], [0, 0, 1, 1], [], []>} : vector<9x72xf32>, vector<72x18xf32>, vector<9x18xf32> -> vector<9x18xf32>
    %cst_39 = arith.constant dense<0.000000e+00> : vector<9x9xf32>
    %39 = tpu.matmul %32, %35, %cst_39 {dimension_numbers = #tpu.dot_dimension_numbers<[1], [1], [0], [0], [0, 0, 1, 0], [], []>} : vector<9x18xf32>, vector<9x18xf32>, vector<9x9xf32> -> vector<9x9xf32>
    %cst_40 = arith.constant 0.235702261 : f32
    %40 = vector.broadcast %cst_40 : f32 to vector<9x9xf32>
    %41 = arith.mulf %39, %40 : vector<9x9xf32>
    %cst_41 = arith.constant dense<0xFF800000> : vector<9xf32>
    %42 = vector.multi_reduction <maximumf>, %41, %cst_41 [1] : vector<9x9xf32> to vector<9xf32>
    %43 = vector.shape_cast %42 : vector<9xf32> to vector<9x1xf32>
    %44 = vector.broadcast %43 : vector<9x1xf32> to vector<9x9xf32>
    %45 = arith.subf %41, %44 : vector<9x9xf32>
    %46 = math.exp %45 : vector<9x9xf32>
    %cst_42 = arith.constant dense<0.000000e+00> : vector<9xf32>
    %47 = vector.multi_reduction <add>, %46, %cst_42 [1] : vector<9x9xf32> to vector<9xf32>
    %48 = vector.shape_cast %47 : vector<9xf32> to vector<9x1xf32>
    %49 = tpu.reciprocal %48 {approx = true} : vector<9x1xf32> -> vector<9x1xf32>
    %50 = vector.broadcast %49 : vector<9x1xf32> to vector<9x9xf32>
    %51 = arith.mulf %46, %50 : vector<9x9xf32>
    %cst_43 = arith.constant dense<0.000000e+00> : vector<9x18xf32>
    %52 = tpu.matmul %51, %38, %cst_43 {dimension_numbers = #tpu.dot_dimension_numbers<[1], [0], [0], [1], [0, 0, 1, 1], [], []>} : vector<9x9xf32>, vector<9x18xf32>, vector<9x18xf32> -> vector<9x18xf32>
    %c1_44 = arith.constant 1 : index
    %c0_45 = arith.constant 0 : index
    %c0_46 = arith.constant 0 : index
    %53 = vector.load %arg3[%c1_44, %c0_45, %c0_46] : memref<4x18x72xf32, #tpu.memory_space<vmem>>, vector<1x18x72xf32>
    %54 = vector.shape_cast %53 : vector<1x18x72xf32> to vector<18x72xf32>
    %cst_47 = arith.constant dense<0.000000e+00> : vector<9x72xf32>
    %55 = tpu.matmul %52, %54, %cst_47 {dimension_numbers = #tpu.dot_dimension_numbers<[1], [0], [0], [1], [0, 0, 1, 1], [], []>} : vector<9x18xf32>, vector<18x72xf32>, vector<9x72xf32> -> vector<9x72xf32>
    %56 = arith.addf %29, %55 : vector<9x72xf32>
    %c0_48 = arith.constant 0 : index
    %c2_49 = arith.constant 2 : index
    %c0_50 = arith.constant 0 : index
    %c0_51 = arith.constant 0 : index
    %57 = vector.load %arg2[%c0_48, %c2_49, %c0_50, %c0_51] : memref<3x4x72x18xf32, #tpu.memory_space<vmem>>, vector<1x1x72x18xf32>
    %58 = vector.shape_cast %57 : vector<1x1x72x18xf32> to vector<72x18xf32>
    %cst_52 = arith.constant dense<0.000000e+00> : vector<9x18xf32>
    %59 = tpu.matmul %1, %58, %cst_52 {dimension_numbers = #tpu.dot_dimension_numbers<[1], [0], [0], [1], [0, 0, 1, 1], [], []>} : vector<9x72xf32>, vector<72x18xf32>, vector<9x18xf32> -> vector<9x18xf32>
    %c1_53 = arith.constant 1 : index
    %c2_54 = arith.constant 2 : index
    %c0_55 = arith.constant 0 : index
    %c0_56 = arith.constant 0 : index
    %60 = vector.load %arg2[%c1_53, %c2_54, %c0_55, %c0_56] : memref<3x4x72x18xf32, #tpu.memory_space<vmem>>, vector<1x1x72x18xf32>
    %61 = vector.shape_cast %60 : vector<1x1x72x18xf32> to vector<72x18xf32>
    %cst_57 = arith.constant dense<0.000000e+00> : vector<9x18xf32>
    %62 = tpu.matmul %1, %61, %cst_57 {dimension_numbers = #tpu.dot_dimension_numbers<[1], [0], [0], [1], [0, 0, 1, 1], [], []>} : vector<9x72xf32>, vector<72x18xf32>, vector<9x18xf32> -> vector<9x18xf32>
    %c2_58 = arith.constant 2 : index
    %c2_59 = arith.constant 2 : index
    %c0_60 = arith.constant 0 : index
    %c0_61 = arith.constant 0 : index
    %63 = vector.load %arg2[%c2_58, %c2_59, %c0_60, %c0_61] : memref<3x4x72x18xf32, #tpu.memory_space<vmem>>, vector<1x1x72x18xf32>
    %64 = vector.shape_cast %63 : vector<1x1x72x18xf32> to vector<72x18xf32>
    %cst_62 = arith.constant dense<0.000000e+00> : vector<9x18xf32>
    %65 = tpu.matmul %1, %64, %cst_62 {dimension_numbers = #tpu.dot_dimension_numbers<[1], [0], [0], [1], [0, 0, 1, 1], [], []>} : vector<9x72xf32>, vector<72x18xf32>, vector<9x18xf32> -> vector<9x18xf32>
    %cst_63 = arith.constant dense<0.000000e+00> : vector<9x9xf32>
    %66 = tpu.matmul %59, %62, %cst_63 {dimension_numbers = #tpu.dot_dimension_numbers<[1], [1], [0], [0], [0, 0, 1, 0], [], []>} : vector<9x18xf32>, vector<9x18xf32>, vector<9x9xf32> -> vector<9x9xf32>
    %cst_64 = arith.constant 0.235702261 : f32
    %67 = vector.broadcast %cst_64 : f32 to vector<9x9xf32>
    %68 = arith.mulf %66, %67 : vector<9x9xf32>
    %cst_65 = arith.constant dense<0xFF800000> : vector<9xf32>
    %69 = vector.multi_reduction <maximumf>, %68, %cst_65 [1] : vector<9x9xf32> to vector<9xf32>
    %70 = vector.shape_cast %69 : vector<9xf32> to vector<9x1xf32>
    %71 = vector.broadcast %70 : vector<9x1xf32> to vector<9x9xf32>
    %72 = arith.subf %68, %71 : vector<9x9xf32>
    %73 = math.exp %72 : vector<9x9xf32>
    %cst_66 = arith.constant dense<0.000000e+00> : vector<9xf32>
    %74 = vector.multi_reduction <add>, %73, %cst_66 [1] : vector<9x9xf32> to vector<9xf32>
    %75 = vector.shape_cast %74 : vector<9xf32> to vector<9x1xf32>
    %76 = tpu.reciprocal %75 {approx = true} : vector<9x1xf32> -> vector<9x1xf32>
    %77 = vector.broadcast %76 : vector<9x1xf32> to vector<9x9xf32>
    %78 = arith.mulf %73, %77 : vector<9x9xf32>
    %cst_67 = arith.constant dense<0.000000e+00> : vector<9x18xf32>
    %79 = tpu.matmul %78, %65, %cst_67 {dimension_numbers = #tpu.dot_dimension_numbers<[1], [0], [0], [1], [0, 0, 1, 1], [], []>} : vector<9x9xf32>, vector<9x18xf32>, vector<9x18xf32> -> vector<9x18xf32>
    %c2_68 = arith.constant 2 : index
    %c0_69 = arith.constant 0 : index
    %c0_70 = arith.constant 0 : index
    %80 = vector.load %arg3[%c2_68, %c0_69, %c0_70] : memref<4x18x72xf32, #tpu.memory_space<vmem>>, vector<1x18x72xf32>
    %81 = vector.shape_cast %80 : vector<1x18x72xf32> to vector<18x72xf32>
    %cst_71 = arith.constant dense<0.000000e+00> : vector<9x72xf32>
    %82 = tpu.matmul %79, %81, %cst_71 {dimension_numbers = #tpu.dot_dimension_numbers<[1], [0], [0], [1], [0, 0, 1, 1], [], []>} : vector<9x18xf32>, vector<18x72xf32>, vector<9x72xf32> -> vector<9x72xf32>
    %83 = arith.addf %56, %82 : vector<9x72xf32>
    %c0_72 = arith.constant 0 : index
    %c3 = arith.constant 3 : index
    %c0_73 = arith.constant 0 : index
    %c0_74 = arith.constant 0 : index
    %84 = vector.load %arg2[%c0_72, %c3, %c0_73, %c0_74] : memref<3x4x72x18xf32, #tpu.memory_space<vmem>>, vector<1x1x72x18xf32>
    %85 = vector.shape_cast %84 : vector<1x1x72x18xf32> to vector<72x18xf32>
    %cst_75 = arith.constant dense<0.000000e+00> : vector<9x18xf32>
    %86 = tpu.matmul %1, %85, %cst_75 {dimension_numbers = #tpu.dot_dimension_numbers<[1], [0], [0], [1], [0, 0, 1, 1], [], []>} : vector<9x72xf32>, vector<72x18xf32>, vector<9x18xf32> -> vector<9x18xf32>
    %c1_76 = arith.constant 1 : index
    %c3_77 = arith.constant 3 : index
    %c0_78 = arith.constant 0 : index
    %c0_79 = arith.constant 0 : index
    %87 = vector.load %arg2[%c1_76, %c3_77, %c0_78, %c0_79] : memref<3x4x72x18xf32, #tpu.memory_space<vmem>>, vector<1x1x72x18xf32>
    %88 = vector.shape_cast %87 : vector<1x1x72x18xf32> to vector<72x18xf32>
    %cst_80 = arith.constant dense<0.000000e+00> : vector<9x18xf32>
    %89 = tpu.matmul %1, %88, %cst_80 {dimension_numbers = #tpu.dot_dimension_numbers<[1], [0], [0], [1], [0, 0, 1, 1], [], []>} : vector<9x72xf32>, vector<72x18xf32>, vector<9x18xf32> -> vector<9x18xf32>
    %c2_81 = arith.constant 2 : index
    %c3_82 = arith.constant 3 : index
    %c0_83 = arith.constant 0 : index
    %c0_84 = arith.constant 0 : index
    %90 = vector.load %arg2[%c2_81, %c3_82, %c0_83, %c0_84] : memref<3x4x72x18xf32, #tpu.memory_space<vmem>>, vector<1x1x72x18xf32>
    %91 = vector.shape_cast %90 : vector<1x1x72x18xf32> to vector<72x18xf32>
    %cst_85 = arith.constant dense<0.000000e+00> : vector<9x18xf32>
    %92 = tpu.matmul %1, %91, %cst_85 {dimension_numbers = #tpu.dot_dimension_numbers<[1], [0], [0], [1], [0, 0, 1, 1], [], []>} : vector<9x72xf32>, vector<72x18xf32>, vector<9x18xf32> -> vector<9x18xf32>
    %cst_86 = arith.constant dense<0.000000e+00> : vector<9x9xf32>
    %93 = tpu.matmul %86, %89, %cst_86 {dimension_numbers = #tpu.dot_dimension_numbers<[1], [1], [0], [0], [0, 0, 1, 0], [], []>} : vector<9x18xf32>, vector<9x18xf32>, vector<9x9xf32> -> vector<9x9xf32>
    %cst_87 = arith.constant 0.235702261 : f32
    %94 = vector.broadcast %cst_87 : f32 to vector<9x9xf32>
    %95 = arith.mulf %93, %94 : vector<9x9xf32>
    %cst_88 = arith.constant dense<0xFF800000> : vector<9xf32>
    %96 = vector.multi_reduction <maximumf>, %95, %cst_88 [1] : vector<9x9xf32> to vector<9xf32>
    %97 = vector.shape_cast %96 : vector<9xf32> to vector<9x1xf32>
    %98 = vector.broadcast %97 : vector<9x1xf32> to vector<9x9xf32>
    %99 = arith.subf %95, %98 : vector<9x9xf32>
    %100 = math.exp %99 : vector<9x9xf32>
    %cst_89 = arith.constant dense<0.000000e+00> : vector<9xf32>
    %101 = vector.multi_reduction <add>, %100, %cst_89 [1] : vector<9x9xf32> to vector<9xf32>
    %102 = vector.shape_cast %101 : vector<9xf32> to vector<9x1xf32>
    %103 = tpu.reciprocal %102 {approx = true} : vector<9x1xf32> -> vector<9x1xf32>
    %104 = vector.broadcast %103 : vector<9x1xf32> to vector<9x9xf32>
    %105 = arith.mulf %100, %104 : vector<9x9xf32>
    %cst_90 = arith.constant dense<0.000000e+00> : vector<9x18xf32>
    %106 = tpu.matmul %105, %92, %cst_90 {dimension_numbers = #tpu.dot_dimension_numbers<[1], [0], [0], [1], [0, 0, 1, 1], [], []>} : vector<9x9xf32>, vector<9x18xf32>, vector<9x18xf32> -> vector<9x18xf32>
    %c3_91 = arith.constant 3 : index
    %c0_92 = arith.constant 0 : index
    %c0_93 = arith.constant 0 : index
    %107 = vector.load %arg3[%c3_91, %c0_92, %c0_93] : memref<4x18x72xf32, #tpu.memory_space<vmem>>, vector<1x18x72xf32>
    %108 = vector.shape_cast %107 : vector<1x18x72xf32> to vector<18x72xf32>
    %cst_94 = arith.constant dense<0.000000e+00> : vector<9x72xf32>
    %109 = tpu.matmul %106, %108, %cst_94 {dimension_numbers = #tpu.dot_dimension_numbers<[1], [0], [0], [1], [0, 0, 1, 1], [], []>} : vector<9x18xf32>, vector<18x72xf32>, vector<9x72xf32> -> vector<9x72xf32>
    %110 = arith.addf %83, %109 : vector<9x72xf32>
    %c0_95 = arith.constant 0 : index
    %c0_96 = arith.constant 0 : index
    %111 = vector.load %arg4[%c0_95, %c0_96] : memref<1x72xf32, #tpu.memory_space<vmem>>, vector<1x72xf32>
    %112 = vector.broadcast %111 : vector<1x72xf32> to vector<9x72xf32>
    %113 = arith.addf %110, %112 : vector<9x72xf32>
    %c0_97 = arith.constant 0 : index
    %c0_98 = arith.constant 0 : index
    %c0_99 = arith.constant 0 : index
    %114 = vector.load %arg5[%c0_97, %c0_98, %c0_99] : memref<1x9x72xf32, #tpu.memory_space<vmem>>, vector<1x9x72xf32>
    %115 = vector.shape_cast %114 : vector<1x9x72xf32> to vector<9x72xf32>
    %116 = vector.shape_cast %113 : vector<9x72xf32> to vector<1x9x72xf32>
    tpu.vector_store %arg5[%c0_97, %c0_98, %c0_99], %116 {strides = array<i32>} : memref<1x9x72xf32, #tpu.memory_space<vmem>>, vector<1x9x72xf32>,
    return
  }
  func.func @transform_0(%arg0: i32) -> (i32, i32, i32) {
    %c0_i32 = arith.constant 0 : i32
    %c0_i32_0 = arith.constant 0 : i32
    %c0_i32_1 = arith.constant 0 : i32
    return %arg0, %c0_i32, %c0_i32_0 : i32, i32, i32
  }
  func.func @transform_1(%arg0: i32) -> (i32, i32, i32, i32) {
    %c0_i32 = arith.constant 0 : i32
    %c0_i32_0 = arith.constant 0 : i32
    %c0_i32_1 = arith.constant 0 : i32
    %c0_i32_2 = arith.constant 0 : i32
    %c0_i32_3 = arith.constant 0 : i32
    return %c0_i32, %c0_i32_0, %c0_i32_1, %c0_i32_2 : i32, i32, i32, i32
  }
  func.func @transform_2(%arg0: i32) -> (i32, i32, i32) {
    %c0_i32 = arith.constant 0 : i32
    %c0_i32_0 = arith.constant 0 : i32
    %c0_i32_1 = arith.constant 0 : i32
    %c0_i32_2 = arith.constant 0 : i32
    return %c0_i32, %c0_i32_0, %c0_i32_1 : i32, i32, i32
  }
  func.func @transform_3(%arg0: i32) -> (i32, i32) {
    %c0_i32 = arith.constant 0 : i32
    %c0_i32_0 = arith.constant 0 : i32
    %c0_i32_1 = arith.constant 0 : i32
    return %c0_i32, %c0_i32_0 : i32, i32
  }
  func.func @transform_4(%arg0: i32) -> (i32, i32, i32) {
    %c0_i32 = arith.constant 0 : i32
    %c0_i32_0 = arith.constant 0 : i32
    %c0_i32_1 = arith.constant 0 : i32
    return %arg0, %c0_i32, %c0_i32_0 : i32, i32, i32
  }
}

</mosaic_0001>

<llo_original>
// kernel: attention_forward_pallas.1
$region0: #{attention_forward_pallas.1}
  #allocation0 [shape = 'u32[]', space=smem, size = 0x4, offset = 0x4, fixed_abs, tag = 'smem constant byte address 0x4 - core index']
  #allocation1 [shape = 'u32[144,128]{1,0:T(1,128)}', space=vmem, size = 0x12000, scoped, tag = 'internal scratch']
  %s0 = inlined_call_operand.vmem [shape: f32[2,9,72], index: 0, kind: input, shape index: {}]
  %s1 = inlined_call_operand.vmem [shape: f32[3,4,72,18], index: 1, kind: input, shape index: {}]
  %s2 = inlined_call_operand.vmem [shape: f32[4,18,72], index: 2, kind: input, shape index: {}]
  %s3 = inlined_call_operand.vmem [shape: f32[1,72], index: 3, kind: input, shape index: {}]
  %s4 = inlined_call_operand.vmem [shape: f32[2,9,72], index: 4, kind: output, shape index: {}]
  %s5 = sld [smem:[#allocation0]]
  $region49: #{attention_forward_pallas.1} parent=0
    _
  %s7 = ssub.s32 1, %s5
  %s8 = scalar_select 0, %s7, %s5
  loop: start=0, step=1, limit=4
  $region2: #{attention_forward_pallas.1} parent=0 // loop_pre_header
    _
  $region3: #{attention_forward_pallas.1} parent=0 // loop_header
    %s10 = sphi 0, %s14
    %p11 = scmp.ge.s32.totalorder %s10, 4
    %s20 = sphi 0, %s22
    %s23 = sphi 0, %s20
    %s24 = sphi 0, %s23
    %s40 = sphi 0, %s24
    %s44 = sphi 0, %s44
    %s46 = sphi 0, %s44
    %s47 = sphi 0, %s46
    %s61 = sphi 0, %s47
    %s65 = sphi 0, %s65
    %s67 = sphi 0, %s65
    %s68 = sphi 0, %s67
    %s82 = sphi 0, %s68
    %s86 = sphi 0, %s86
    %s88 = sphi 0, %s86
    %s89 = sphi 0, %s88
    %s103 = sphi 0, %s89
    %s109 = sphi 0, %s111
    %s112 = sphi 0, %s109
    %s113 = sphi 0, %s112
    %s129 = sphi 0, %s113
  $region4: #{attention_forward_pallas.1} parent=0 // loop_header_branch
    %13 = sbr.rel (%p11) target = $region8
  $region5: #{attention_forward_pallas.1} parent=0 // loop_body
    %s15 = ssub.s32 %s10, 1
    %s16 = ssub.s32 %s10, 2
    %s17 = sadd.s32 %s10, 1
    %s18 = ssub.s32 %s10, %s17
    %p19 = scmp.eq.s32.totalorder %s18, 0
    %s21 = sadd.s32 %s20, 1
    %s22 = scalar_select %p19, %s20, %s21
    %p25 = pneg %p19
    %p26 = scmp.eq.s32.totalorder %s10, 1
    %p27 = por %p25, %p26
    %p28 = scmp.ne.s32.totalorder %s20, %s23
    %p29 = scmp.eq.s32.totalorder %s10, 0
    %p30 = por %p28, %p29
    %p31 = scmp.ne.s32.totalorder %s20, %s23
    %p32 = scmp.eq.s32.totalorder %s15, 1
    %p33 = por %p31, %p32
    %p34 = scmp.ne.s32.totalorder %s23, %s24
    %p35 = scmp.eq.s32.totalorder %s15, 0
    %p36 = por %p34, %p35
    %p37 = scmp.ne.s32.totalorder %s23, %s24
    %p38 = scmp.eq.s32.totalorder %s16, 1
    %p39 = por %p37, %p38
    %p41 = scmp.ne.s32.totalorder %s24, %s40
    %p42 = scmp.eq.s32.totalorder %s16, 0
    %p43 = por %p41, %p42
    %s45 = sadd.s32 %s44, 1
    %p48 = scmp.eq.s32.totalorder %s10, 1
    %p49 = scmp.ne.s32.totalorder %s44, %s46
    %p50 = scmp.eq.s32.totalorder %s10, 0
    %p51 = por %p49, %p50
    %p52 = scmp.ne.s32.totalorder %s44, %s46
    %p53 = scmp.eq.s32.totalorder %s15, 1
    %p54 = por %p52, %p53
    %p55 = scmp.ne.s32.totalorder %s46, %s47
    %p56 = scmp.eq.s32.totalorder %s15, 0
    %p57 = por %p55, %p56
    %p58 = scmp.ne.s32.totalorder %s46, %s47
    %p59 = scmp.eq.s32.totalorder %s16, 1
    %p60 = por %p58, %p59
    %p62 = scmp.ne.s32.totalorder %s47, %s61
    %p63 = scmp.eq.s32.totalorder %s16, 0
    %p64 = por %p62, %p63
    %s66 = sadd.s32 %s65, 1
    %p69 = scmp.eq.s32.totalorder %s10, 1
    %p70 = scmp.ne.s32.totalorder %s65, %s67
    %p71 = scmp.eq.s32.totalorder %s10, 0
    %p72 = por %p70, %p71
    %p73 = scmp.ne.s32.totalorder %s65, %s67
    %p74 = scmp.eq.s32.totalorder %s15, 1
    %p75 = por %p73, %p74
    %p76 = scmp.ne.s32.totalorder %s67, %s68
    %p77 = scmp.eq.s32.totalorder %s15, 0
    %p78 = por %p76, %p77
    %p79 = scmp.ne.s32.totalorder %s67, %s68
    %p80 = scmp.eq.s32.totalorder %s16, 1
    %p81 = por %p79, %p80
    %p83 = scmp.ne.s32.totalorder %s68, %s82
    %p84 = scmp.eq.s32.totalorder %s16, 0
    %p85 = por %p83, %p84
    %s87 = sadd.s32 %s86, 1
    %p90 = scmp.eq.s32.totalorder %s10, 1
    %p91 = scmp.ne.s32.totalorder %s86, %s88
    %p92 = scmp.eq.s32.totalorder %s10, 0
    %p93 = por %p91, %p92
    %p94 = scmp.ne.s32.totalorder %s86, %s88
    %p95 = scmp.eq.s32.totalorder %s15, 1
    %p96 = por %p94, %p95
    %p97 = scmp.ne.s32.totalorder %s88, %s89
    %p98 = scmp.eq.s32.totalorder %s15, 0
    %p99 = por %p97, %p98
    %p100 = scmp.ne.s32.totalorder %s88, %s89
    %p101 = scmp.eq.s32.totalorder %s16, 1
    %p102 = por %p100, %p101
    %p104 = scmp.ne.s32.totalorder %s89, %s103
    %p105 = scmp.eq.s32.totalorder %s16, 0
    %p106 = por %p104, %p105
    %s107 = ssub.s32 %s10, %s17
    %p108 = scmp.eq.s32.totalorder %s107, 0
    %s110 = sadd.s32 %s109, 1
    %s111 = scalar_select %p108, %s109, %s110
    %p114 = pneg %p108
    %p115 = scmp.eq.s32.totalorder %s10, 1
    %p116 = por %p114, %p115
    %p117 = scmp.ne.s32.totalorder %s109, %s112
    %p118 = scmp.eq.s32.totalorder %s10, 0
    %p119 = por %p117, %p118
    %p120 = scmp.ne.s32.totalorder %s109, %s112
    %p121 = scmp.eq.s32.totalorder %s15, 1
    %p122 = por %p120, %p121
    %p123 = scmp.ne.s32.totalorder %s112, %s113
    %p124 = scmp.eq.s32.totalorder %s15, 0
    %p125 = por %p123, %p124
    %p126 = scmp.ne.s32.totalorder %s112, %s113
    %p127 = scmp.eq.s32.totalorder %s16, 1
    %p128 = por %p126, %p127
    %p130 = scmp.ne.s32.totalorder %s113, %s129
    %p131 = scmp.eq.s32.totalorder %s16, 0
    %p132 = por %p130, %p131
    %p133 = scmp.le.s32.totalorder 1, %s10
    %p134 = scmp.lt.s32.totalorder %s10, 3
    %p135 = pnand %p133, %p134
    %p136 = pneg %p135
    // Predicated region
    $region9: #{attention_forward_pallas.1} parent=5 // pred_check
      _
    $region10: #{attention_forward_pallas.1} parent=5 // pred_check_branch
      %138 = sbr.rel (%p135) target = $region12
    $region11: #{attention_forward_pallas.1} parent=5 // pred_region
      %s139 = ssub.s32 %s10, 1
      // Predicated region
      $region13: #{attention_forward_pallas.1} parent=11 // pred_check
        %p140 = pneg %p57
      $region14: #{attention_forward_pallas.1} parent=11 // pred_check_branch
        %142 = sbr.rel (%p140) target = $region16
      $region15: #{attention_forward_pallas.1} parent=11 // pred_region
        _
      $region16: #{attention_forward_pallas.1} parent=11 // pred_fallthru
        _
      // Predicated region
      $region17: #{attention_forward_pallas.1} parent=11 // pred_check
        %p143 = pneg %p78
      $region18: #{attention_forward_pallas.1} parent=11 // pred_check_branch
        %145 = sbr.rel (%p143) target = $region20
      $region19: #{attention_forward_pallas.1} parent=11 // pred_region
        _
      $region20: #{attention_forward_pallas.1} parent=11 // pred_fallthru
        _
      // Predicated region
      $region21: #{attention_forward_pallas.1} parent=11 // pred_check
        %p146 = pneg %p99
      $region22: #{attention_forward_pallas.1} parent=11 // pred_check_branch
        %148 = sbr.rel (%p146) target = $region24
      $region23: #{attention_forward_pallas.1} parent=11 // pred_region
        _
      $region24: #{attention_forward_pallas.1} parent=11 // pred_fallthru
        _
    $region12: #{attention_forward_pallas.1} parent=5 // pred_fallthru
      _
    %p149 = scmp.lt.s32.totalorder %s10, 2
    // Predicated region
    $region25: #{attention_forward_pallas.1} parent=5 // pred_check
      %p150 = pneg %p149
    $region26: #{attention_forward_pallas.1} parent=5 // pred_check_branch
      %152 = sbr.rel (%p150) target = $region28
    $region27: #{attention_forward_pallas.1} parent=5 // pred_region
      // Predicated region
      $region29: #{attention_forward_pallas.1} parent=27 // pred_check
        %p153 = pneg %p30
      $region30: #{attention_forward_pallas.1} parent=27 // pred_check_branch
        %155 = sbr.rel (%p153) target = $region32
      $region31: #{attention_forward_pallas.1} parent=27 // pred_region
        %p156 = scmp.lt.s32.totalorder %s10, 1
        %s157 = scalar_select %p156, %s10, 1
        %s158 = smul.addr %s157, 2
        %s159 = smul.addr %s158, 8
        %s160 = scalar_lea.vmem %s0, %s159
      $region32: #{attention_forward_pallas.1} parent=27 // pred_fallthru
        _
    $region28: #{attention_forward_pallas.1} parent=5 // pred_fallthru
      _
    %p161 = scmp.le.s32.totalorder 1, %s10
    %p162 = scmp.lt.s32.totalorder %s10, 3
    %p163 = pnand %p161, %p162
    %p164 = pneg %p163
    // Predicated region
    $region33: #{attention_forward_pallas.1} parent=5 // pred_check
      _
    $region34: #{attention_forward_pallas.1} parent=5 // pred_check_branch
      %166 = sbr.rel (%p163) target = $region36
    $region35: #{attention_forward_pallas.1} parent=5 // pred_region
      %s167 = ssub.s32 %s10, 1
      %p168 = scmp.lt.s32.totalorder %s15, 1
      %s169 = scalar_select %p168, %s15, 1
      %s170 = smul.addr %s169, 2
      %s171 = smul.addr %s170, 8
      %s172 = scalar_lea.vmem %s0, %s171
      %p173 = pneg %p36
      %p174 = pneg %p33
      %p175 = pneg %p57
      %p176 = pneg %p54
      %p177 = pneg %p78
      %p178 = pneg %p75
      %p179 = pneg %p99
      %p180 = pneg %p96
      %p181 = pneg %p125
      %p182 = pneg %p122
      %p183 = scmp.lt.s32.totalorder %s15, 1
      %s184 = scalar_select %p183, %s15, 1
      %s185 = smul.addr %s184, 2
      %s186 = smul.addr %s185, 8
      %s187 = scalar_lea.vmem %s4, %s186
      %p188 = scmp.lt.s32.totalorder %s15, 1
      %s189 = scalar_select %p188, %s15, 1
      %s190 = smul.addr %s189, 2
      %s191 = smul.addr %s190, 8
      %s192 = scalar_lea.vmem %s0, %s191
      %p193 = scmp.lt.s32.totalorder %s15, 1
      %s194 = scalar_select %p193, %s15, 1
      %s195 = smul.addr %s194, 2
      %s196 = smul.addr %s195, 8
      %s197 = scalar_lea.vmem %s4, %s196
      %v198 = vld [vmem:[%s192] sm:$0xff]
      %v199 = vld [vmem:[%s192 + $0x8] sm:$0x1]
      %v200 = vld [vmem:[%s1] sm:$0xff]
      %v201 = vld [vmem:[%s1 + $0x8] sm:$0xff]
      %v202 = vld [vmem:[%s1 + $0x10] sm:$0xff]
      %v203 = vld [vmem:[%s1 + $0x18] sm:$0xff]
      %v204 = vld [vmem:[%s1 + $0x20] sm:$0xff]
      %v205 = vld [vmem:[%s1 + $0x28] sm:$0xff]
      %v206 = vld [vmem:[%s1 + $0x30] sm:$0xff]
      %v207 = vld [vmem:[%s1 + $0x38] sm:$0xff]
      %v208 = vld [vmem:[%s1 + $0x40] sm:$0xff]
      %vm209 = vcmask 588800
      %v211 = vsel %vm209, %v198, 0
      %v214 = vsel %vm209, %v199, 0
      %216 = vmatprep.subr.mxu0 0.0
      %217 = vmatpush1.msra.mxu0 0.0
      %218 = vmatprep.subr.mxu0 0.0
      %219 = vmatpush1.msra.mxu0 0.0
      %220 = vmatprep.subr.mxu0 0.0
      %221 = vmatpush1.msra.mxu0 0.0
      %222 = vmatprep.subr.mxu0 0.0
      %223 = vmatpush1.msra.mxu0 0.0
      %224 = vmatprep.subr.mxu0 0.0
      %225 = vmatpush1.msra.mxu0 0.0
      %226 = vmatprep.subr.mxu0 0.0
      %227 = vmatpush1.msra.mxu0 0.0
      %228 = vmatprep.subr.mxu0 0.0
      %229 = vmatpush1.msra.mxu0 0.0
      %230 = vmatprep.subr.mxu0 0.0
      %231 = vmatpush1.msra.mxu0 %v208
      %232 = vmatprep.subr.mxu0 0.0
      %233 = vmatpush1.msra.mxu0 %v207
      %234 = vmatprep.subr.mxu0 0.0
      %235 = vmatpush1.msra.mxu0 %v206
      %236 = vmatprep.subr.mxu0 0.0
      %237 = vmatpush1.msra.mxu0 %v205
      %238 = vmatprep.subr.mxu0 0.0
      %239 = vmatpush1.msra.mxu0 %v204
      %240 = vmatprep.subr.mxu0 0.0
      %241 = vmatpush1.msra.mxu0 %v203
      %242 = vmatprep.subr.mxu0 0.0
      %243 = vmatpush1.msra.mxu0 %v202
      %244 = vmatprep.subr.mxu0 0.0
      %245 = vmatpush1.msra.mxu0 %v201
      %246 = vmatprep.subr.mxu0 0.0
      %247 = vmatpush1.msra.mxu0 %v200
      %248 = vmatprep.subr.mxu0 0.0
      %249 = vmatpush2.msra.mxu0 0.0
      %250 = vmatprep.subr.mxu0 0.0
      %251 = vmatpush2.msra.mxu0 0.0
      %252 = vmatprep.subr.mxu0 0.0
      %253 = vmatpush2.msra.mxu0 0.0
      %254 = vmatprep.subr.mxu0 0.0
      %255 = vmatpush2.msra.mxu0 0.0
      %256 = vmatprep.subr.mxu0 0.0
      %257 = vmatpush2.msra.mxu0 0.0
      %258 = vmatprep.subr.mxu0 0.0
      %259 = vmatpush2.msra.mxu0 0.0
      %260 = vmatprep.subr.mxu0 0.0
      %261 = vmatpush2.msra.mxu0 0.0
      %262 = vmatprep.subr.mxu0 0.0
      %263 = vmatpush2.msra.mxu0 0.0
      %264 = vmatprep.subr.mxu0 0.0
      %265 = vmatpush2.msra.mxu0 0.0
      %266 = vmatprep.subr.mxu0 0.0
      %267 = vmatpush2.msra.mxu0 0.0
      %268 = vmatprep.subr.mxu0 0.0
      %269 = vmatpush2.msra.mxu0 0.0
      %270 = vmatprep.subr.mxu0 0.0
      %271 = vmatpush2.msra.mxu0 0.0
      %272 = vmatprep.subr.mxu0 0.0
      %273 = vmatpush2.msra.mxu0 0.0
      %274 = vmatprep.subr.mxu0 0.0
      %275 = vmatpush2.msra.mxu0 0.0
      %276 = vmatprep.subr.mxu0 0.0
      %277 = vmatpush2.msra.mxu0 0.0
      %278 = vmatprep.subr.mxu0 0.0
      %279 = vmatpush2.msra.mxu0 0.0
      %280 = vmatprep.mubr.f32.mxu0 0.0
      %281 = vmatmul.mubr.f32.gmra.mxu0 %v211
      %v282 = vpop.f32.mrf.mxu0
      %v283 = vadd.f32 0.0, %v282
      %v284 = vpop.f32.mrf.mxu0
      %285 = vmatprep.mubr.f32.mxu0 0.0
      %286 = vmatmul.mubr.f32.gmra.mxu0 %v214
      %v287 = vpop.f32.mrf.mxu0
      %v288 = vadd.f32 0.0, %v287
      %v289 = vpop.f32.mrf.mxu0
      %290 = vdwg.mxu0
      %s291 = scalar_lea.vmem %s1, 288
      %v292 = vld [vmem:[%s291] sm:$0xff]
      %v293 = vld [vmem:[%s291 + $0x8] sm:$0xff]
      %v294 = vld [vmem:[%s291 + $0x10] sm:$0xff]
      %v295 = vld [vmem:[%s291 + $0x18] sm:$0xff]
      %v296 = vld [vmem:[%s291 + $0x20] sm:$0xff]
      %v297 = vld [vmem:[%s291 + $0x28] sm:$0xff]
      %v298 = vld [vmem:[%s291 + $0x30] sm:$0xff]
      %v299 = vld [vmem:[%s291 + $0x38] sm:$0xff]
      %v300 = vld [vmem:[%s291 + $0x40] sm:$0xff]
      %301 = vmatprep.subr.mxu0 0.0
      %302 = vmatpush1.msra.mxu0 0.0
      %303 = vmatprep.subr.mxu0 0.0
      %304 = vmatpush1.msra.mxu0 0.0
      %305 = vmatprep.subr.mxu0 0.0
      %306 = vmatpush1.msra.mxu0 0.0
      %307 = vmatprep.subr.mxu0 0.0
      %308 = vmatpush1.msra.mxu0 0.0
      %309 = vmatprep.subr.mxu0 0.0
      %310 = vmatpush1.msra.mxu0 0.0
      %311 = vmatprep.subr.mxu0 0.0
      %312 = vmatpush1.msra.mxu0 0.0
      %313 = vmatprep.subr.mxu0 0.0
      %314 = vmatpush1.msra.mxu0 0.0
      %315 = vmatprep.subr.mxu0 0.0
      %316 = vmatpush1.msra.mxu0 %v300
      %317 = vmatprep.subr.mxu0 0.0
      %318 = vmatpush1.msra.mxu0 %v299
      %319 = vmatprep.subr.mxu0 0.0
      %320 = vmatpush1.msra.mxu0 %v298
      %321 = vmatprep.subr.mxu0 0.0
      %322 = vmatpush1.msra.mxu0 %v297
      %323 = vmatprep.subr.mxu0 0.0
      %324 = vmatpush1.msra.mxu0 %v296
      %325 = vmatprep.subr.mxu0 0.0
      %326 = vmatpush1.msra.mxu0 %v295
      %327 = vmatprep.subr.mxu0 0.0
      %328 = vmatpush1.msra.mxu0 %v294
      %329 = vmatprep.subr.mxu0 0.0
      %330 = vmatpush1.msra.mxu0 %v293
      %331 = vmatprep.subr.mxu0 0.0
      %332 = vmatpush1.msra.mxu0 %v292
      %333 = vmatprep.subr.mxu0 0.0
      %334 = vmatpush2.msra.mxu0 0.0
      %335 = vmatprep.subr.mxu0 0.0
      %336 = vmatpush2.msra.mxu0 0.0
      %337 = vmatprep.subr.mxu0 0.0
      %338 = vmatpush2.msra.mxu0 0.0
      %339 = vmatprep.subr.mxu0 0.0
      %340 = vmatpush2.msra.mxu0 0.0
      %341 = vmatprep.subr.mxu0 0.0
      %342 = vmatpush2.msra.mxu0 0.0
      %343 = vmatprep.subr.mxu0 0.0
      %344 = vmatpush2.msra.mxu0 0.0
      %345 = vmatprep.subr.mxu0 0.0
      %346 = vmatpush2.msra.mxu0 0.0
      %347 = vmatprep.subr.mxu0 0.0
      %348 = vmatpush2.msra.mxu0 0.0
      %349 = vmatprep.subr.mxu0 0.0
      %350 = vmatpush2.msra.mxu0 0.0
      %351 = vmatprep.subr.mxu0 0.0
      %352 = vmatpush2.msra.mxu0 0.0
      %353 = vmatprep.subr.mxu0 0.0
      %354 = vmatpush2.msra.mxu0 0.0
      %355 = vmatprep.subr.mxu0 0.0
      %356 = vmatpush2.msra.mxu0 0.0
      %357 = vmatprep.subr.mxu0 0.0
      %358 = vmatpush2.msra.mxu0 0.0
      %359 = vmatprep.subr.mxu0 0.0
      %360 = vmatpush2.msra.mxu0 0.0
      %361 = vmatprep.subr.mxu0 0.0
      %362 = vmatpush2.msra.mxu0 0.0
      %363 = vmatprep.subr.mxu0 0.0
      %364 = vmatpush2.msra.mxu0 0.0
      %365 = vmatprep.mubr.f32.mxu0 0.0
      %366 = vmatmul.mubr.f32.gmra.mxu0 %v211
      %v367 = vpop.f32.mrf.mxu0
      %v368 = vadd.f32 0.0, %v367
      %v369 = vpop.f32.mrf.mxu0
      %370 = vmatprep.mubr.f32.mxu0 0.0
      %371 = vmatmul.mubr.f32.gmra.mxu0 %v214
      %v372 = vpop.f32.mrf.mxu0
      %v373 = vadd.f32 0.0, %v372
      %v374 = vpop.f32.mrf.mxu0
      %375 = vdwg.mxu0
      %s376 = scalar_lea.vmem %s1, 576
      %v377 = vld [vmem:[%s376] sm:$0xff]
      %v378 = vld [vmem:[%s376 + $0x8] sm:$0xff]
      %v379 = vld [vmem:[%s376 + $0x10] sm:$0xff]
      %v380 = vld [vmem:[%s376 + $0x18] sm:$0xff]
      %v381 = vld [vmem:[%s376 + $0x20] sm:$0xff]
      %v382 = vld [vmem:[%s376 + $0x28] sm:$0xff]
      %v383 = vld [vmem:[%s376 + $0x30] sm:$0xff]
      %v384 = vld [vmem:[%s376 + $0x38] sm:$0xff]
      %v385 = vld [vmem:[%s376 + $0x40] sm:$0xff]
      %386 = vmatprep.subr.mxu0 0.0
      %387 = vmatpush1.msra.mxu0 0.0
      %388 = vmatprep.subr.mxu0 0.0
      %389 = vmatpush1.msra.mxu0 0.0
      %390 = vmatprep.subr.mxu0 0.0
      %391 = vmatpush1.msra.mxu0 0.0
      %392 = vmatprep.subr.mxu0 0.0
      %393 = vmatpush1.msra.mxu0 0.0
      %394 = vmatprep.subr.mxu0 0.0
      %395 = vmatpush1.msra.mxu0 0.0
      %396 = vmatprep.subr.mxu0 0.0
      %397 = vmatpush1.msra.mxu0 0.0
      %398 = vmatprep.subr.mxu0 0.0
      %399 = vmatpush1.msra.mxu0 0.0
      %400 = vmatprep.subr.mxu0 0.0
      %401 = vmatpush1.msra.mxu0 %v385
      %402 = vmatprep.subr.mxu0 0.0
      %403 = vmatpush1.msra.mxu0 %v384
      %404 = vmatprep.subr.mxu0 0.0
      %405 = vmatpush1.msra.mxu0 %v383
      %406 = vmatprep.subr.mxu0 0.0
      %407 = vmatpush1.msra.mxu0 %v382
      %408 = vmatprep.subr.mxu0 0.0
      %409 = vmatpush1.msra.mxu0 %v381
      %410 = vmatprep.subr.mxu0 0.0
      %411 = vmatpush1.msra.mxu0 %v380
      %412 = vmatprep.subr.mxu0 0.0
      %413 = vmatpush1.msra.mxu0 %v379
      %414 = vmatprep.subr.mxu0 0.0
      %415 = vmatpush1.msra.mxu0 %v378
      %416 = vmatprep.subr.mxu0 0.0
      %417 = vmatpush1.msra.mxu0 %v377
      %418 = vmatprep.subr.mxu0 0.0
      %419 = vmatpush2.msra.mxu0 0.0
      %420 = vmatprep.subr.mxu0 0.0
      %421 = vmatpush2.msra.mxu0 0.0
      %422 = vmatprep.subr.mxu0 0.0
      %423 = vmatpush2.msra.mxu0 0.0
      %424 = vmatprep.subr.mxu0 0.0
      %425 = vmatpush2.msra.mxu0 0.0
      %426 = vmatprep.subr.mxu0 0.0
      %427 = vmatpush2.msra.mxu0 0.0
      %428 = vmatprep.subr.mxu0 0.0
      %429 = vmatpush2.msra.mxu0 0.0
      %430 = vmatprep.subr.mxu0 0.0
      %431 = vmatpush2.msra.mxu0 0.0
      %432 = vmatprep.subr.mxu0 0.0
      %433 = vmatpush2.msra.mxu0 0.0
      %434 = vmatprep.subr.mxu0 0.0
      %435 = vmatpush2.msra.mxu0 0.0
      %436 = vmatprep.subr.mxu0 0.0
      %437 = vmatpush2.msra.mxu0 0.0
      %438 = vmatprep.subr.mxu0 0.0
      %439 = vmatpush2.msra.mxu0 0.0
      %440 = vmatprep.subr.mxu0 0.0
      %441 = vmatpush2.msra.mxu0 0.0
      %442 = vmatprep.subr.mxu0 0.0
      %443 = vmatpush2.msra.mxu0 0.0
      %444 = vmatprep.subr.mxu0 0.0
      %445 = vmatpush2.msra.mxu0 0.0
      %446 = vmatprep.subr.mxu0 0.0
      %447 = vmatpush2.msra.mxu0 0.0
      %448 = vmatprep.subr.mxu0 0.0
      %449 = vmatpush2.msra.mxu0 0.0
      %450 = vmatprep.mubr.f32.mxu0 0.0
      %451 = vmatmul.mubr.f32.gmra.mxu0 %v211
      %v452 = vpop.f32.mrf.mxu0
      %v453 = vadd.f32 0.0, %v452
      %v454 = vpop.f32.mrf.mxu0
      %455 = vmatprep.mubr.f32.mxu0 0.0
      %456 = vmatmul.mubr.f32.gmra.mxu0 %v214
      %v457 = vpop.f32.mrf.mxu0
      %v458 = vadd.f32 0.0, %v457
      %v459 = vpop.f32.mrf.mxu0
      %460 = vdwg.mxu0
      %vm461 = vcmask 146432
      %v463 = vsel %vm461, %v283, 0
      %v466 = vsel %vm461, %v288, 0
      %v469 = vsel %vm461, %v368, 0
      %v472 = vsel %vm461, %v373, 0
      %474 = vmatprep.subr.mxu0 0.0
      %475 = vmatpush1.xpose.msra.mxu0 0.0
      %476 = vmatprep.subr.mxu0 0.0
      %477 = vmatpush1.xpose.msra.mxu0 0.0
      %478 = vmatprep.subr.mxu0 0.0
      %479 = vmatpush1.xpose.msra.mxu0 0.0
      %480 = vmatprep.subr.mxu0 0.0
      %481 = vmatpush1.xpose.msra.mxu0 0.0
      %482 = vmatprep.subr.mxu0 0.0
      %483 = vmatpush1.xpose.msra.mxu0 0.0
      %484 = vmatprep.subr.mxu0 0.0
      %485 = vmatpush1.xpose.msra.mxu0 0.0
      %486 = vmatprep.subr.mxu0 0.0
      %487 = vmatpush1.xpose.msra.mxu0 0.0
      %488 = vmatprep.subr.mxu0 0.0
      %489 = vmatpush1.xpose.msra.mxu0 0.0
      %490 = vmatprep.subr.mxu0 0.0
      %491 = vmatpush1.xpose.msra.mxu0 0.0
      %492 = vmatprep.subr.mxu0 0.0
      %493 = vmatpush1.xpose.msra.mxu0 0.0
      %494 = vmatprep.subr.mxu0 0.0
      %495 = vmatpush1.xpose.msra.mxu0 0.0
      %496 = vmatprep.subr.mxu0 0.0
      %497 = vmatpush1.xpose.msra.mxu0 0.0
      %498 = vmatprep.subr.mxu0 0.0
      %499 = vmatpush1.xpose.msra.mxu0 0.0
      %500 = vmatprep.subr.mxu0 0.0
      %501 = vmatpush1.xpose.msra.mxu0 0.0
      %502 = vmatprep.subr.mxu0 0.0
      %503 = vmatpush1.xpose.msra.mxu0 %v472
      %504 = vmatprep.subr.mxu0 0.0
      %505 = vmatpush1.xpose.msra.mxu0 %v469
      %506 = vmatprep.subr.mxu0 0.0
      %507 = vmatpush2.xpose.msra.mxu0 0.0
      %508 = vmatprep.subr.mxu0 0.0
      %509 = vmatpush2.xpose.msra.mxu0 0.0
      %510 = vmatprep.subr.mxu0 0.0
      %511 = vmatpush2.xpose.msra.mxu0 0.0
      %512 = vmatprep.subr.mxu0 0.0
      %513 = vmatpush2.xpose.msra.mxu0 0.0
      %514 = vmatprep.subr.mxu0 0.0
      %515 = vmatpush2.xpose.msra.mxu0 0.0
      %516 = vmatprep.subr.mxu0 0.0
      %517 = vmatpush2.xpose.msra.mxu0 0.0
      %518 = vmatprep.subr.mxu0 0.0
      %519 = vmatpush2.xpose.msra.mxu0 0.0
      %520 = vmatprep.subr.mxu0 0.0
      %521 = vmatpush2.xpose.msra.mxu0 0.0
      %522 = vmatprep.subr.mxu0 0.0
      %523 = vmatpush2.xpose.msra.mxu0 0.0
      %524 = vmatprep.subr.mxu0 0.0
      %525 = vmatpush2.xpose.msra.mxu0 0.0
      %526 = vmatprep.subr.mxu0 0.0
      %527 = vmatpush2.xpose.msra.mxu0 0.0
      %528 = vmatprep.subr.mxu0 0.0
      %529 = vmatpush2.xpose.msra.mxu0 0.0
      %530 = vmatprep.subr.mxu0 0.0
      %531 = vmatpush2.xpose.msra.mxu0 0.0
      %532 = vmatprep.subr.mxu0 0.0
      %533 = vmatpush2.xpose.msra.mxu0 0.0
      %534 = vmatprep.subr.mxu0 0.0
      %535 = vmatpush2.xpose.msra.mxu0 0.0
      %536 = vmatprep.subr.mxu0 0.0
      %537 = vmatpush2.xpose.msra.mxu0 0.0
      %538 = vmatprep.mubr.f32.mxu0 0.0
      %539 = vmatmul.mubr.f32.gmra.mxu0 %v463
      %v540 = vpop.f32.mrf.mxu0
      %v541 = vadd.f32 0.0, %v540
      %v542 = vpop.f32.mrf.mxu0
      %543 = vmatprep.mubr.f32.mxu0 0.0
      %544 = vmatmul.mubr.f32.gmra.mxu0 %v466
      %v545 = vpop.f32.mrf.mxu0
      %v546 = vadd.f32 0.0, %v545
      %v547 = vpop.f32.mrf.mxu0
      %548 = vdwg.mxu0
      %v549 = vmul.f32 %v541, 0.23570226
      %v550 = vmul.f32 %v546, 0.23570226
      %vm551 = vcmask 72704
      %v552 = vsel %vm551, %v549, -inf
      %553 = vmax.xlane.f32.xlu0 %v552
      %v554 = vpop.xlane.xlu0 %553
      %vm555 = vcmask 65536
      %v556 = vsel %vm555, %v550, -inf
      %557 = vmax.xlane.f32.xlu0 %v556
      %v558 = vpop.xlane.xlu0 %557
      %v559 = vsub.f32 %v549, %v554
      %v560 = vsub.f32 %v550, %v558
      %v561 = vmul.f32 %v559, 1.442695
      %v562 = vpow.pop %v561
      %v563 = vmul.f32 %v560, 1.442695
      %v564 = vpow.pop %v563
      %v565 = vsel %vm551, %v562, 0.0
      %566 = vadd.xlane.f32.xlu0 %v565
      %v567 = vpop.xlane.xlu0 %566
      %v568 = vsel %vm555, %v564, 0.0
      %569 = vadd.xlane.f32.xlu0 %v568
      %v570 = vpop.xlane.xlu0 %569
      %v571 = vrcp.pop %v567
      %v572 = vrcp.pop %v570
      %v573 = vmul.f32 %v562, %v571
      %v574 = vmul.f32 %v564, %v572
      %v576 = vsel %vm551, %v573, 0
      %v579 = vsel %vm551, %v574, 0
      %vm581 = vcmask 1040384
      %v583 = vsel %vm581, %v458, 0
      %585 = vmatprep.subr.mxu0 0.0
      %586 = vmatpush1.msra.mxu0 0.0
      %587 = vmatprep.subr.mxu0 0.0
      %588 = vmatpush1.msra.mxu0 0.0
      %589 = vmatprep.subr.mxu0 0.0
      %590 = vmatpush1.msra.mxu0 0.0
      %591 = vmatprep.subr.mxu0 0.0
      %592 = vmatpush1.msra.mxu0 0.0
      %593 = vmatprep.subr.mxu0 0.0
      %594 = vmatpush1.msra.mxu0 0.0
      %595 = vmatprep.subr.mxu0 0.0
      %596 = vmatpush1.msra.mxu0 0.0
      %597 = vmatprep.subr.mxu0 0.0
      %598 = vmatpush1.msra.mxu0 0.0
      %599 = vmatprep.subr.mxu0 0.0
      %600 = vmatpush1.msra.mxu0 0.0
      %601 = vmatprep.subr.mxu0 0.0
      %602 = vmatpush1.msra.mxu0 0.0
      %603 = vmatprep.subr.mxu0 0.0
      %604 = vmatpush1.msra.mxu0 0.0
      %605 = vmatprep.subr.mxu0 0.0
      %606 = vmatpush1.msra.mxu0 0.0
      %607 = vmatprep.subr.mxu0 0.0
      %608 = vmatpush1.msra.mxu0 0.0
      %609 = vmatprep.subr.mxu0 0.0
      %610 = vmatpush1.msra.mxu0 0.0
      %611 = vmatprep.subr.mxu0 0.0
      %612 = vmatpush1.msra.mxu0 0.0
      %613 = vmatprep.subr.mxu0 0.0
      %614 = vmatpush1.msra.mxu0 %v583
      %615 = vmatprep.subr.mxu0 0.0
      %616 = vmatpush1.msra.mxu0 %v453
      %617 = vmatprep.subr.mxu0 0.0
      %618 = vmatpush2.msra.mxu0 0.0
      %619 = vmatprep.subr.mxu0 0.0
      %620 = vmatpush2.msra.mxu0 0.0
      %621 = vmatprep.subr.mxu0 0.0
      %622 = vmatpush2.msra.mxu0 0.0
      %623 = vmatprep.subr.mxu0 0.0
      %624 = vmatpush2.msra.mxu0 0.0
      %625 = vmatprep.subr.mxu0 0.0
      %626 = vmatpush2.msra.mxu0 0.0
      %627 = vmatprep.subr.mxu0 0.0
      %628 = vmatpush2.msra.mxu0 0.0
      %629 = vmatprep.subr.mxu0 0.0
      %630 = vmatpush2.msra.mxu0 0.0
      %631 = vmatprep.subr.mxu0 0.0
      %632 = vmatpush2.msra.mxu0 0.0
      %633 = vmatprep.subr.mxu0 0.0
      %634 = vmatpush2.msra.mxu0 0.0
      %635 = vmatprep.subr.mxu0 0.0
      %636 = vmatpush2.msra.mxu0 0.0
      %637 = vmatprep.subr.mxu0 0.0
      %638 = vmatpush2.msra.mxu0 0.0
      %639 = vmatprep.subr.mxu0 0.0
      %640 = vmatpush2.msra.mxu0 0.0
      %641 = vmatprep.subr.mxu0 0.0
      %642 = vmatpush2.msra.mxu0 0.0
      %643 = vmatprep.subr.mxu0 0.0
      %644 = vmatpush2.msra.mxu0 0.0
      %645 = vmatprep.subr.mxu0 0.0
      %646 = vmatpush2.msra.mxu0 0.0
      %647 = vmatprep.subr.mxu0 0.0
      %648 = vmatpush2.msra.mxu0 0.0
      %649 = vmatprep.mubr.f32.mxu0 0.0
      %650 = vmatmul.mubr.f32.gmra.mxu0 %v576
      %v651 = vpop.f32.mrf.mxu0
      %v652 = vadd.f32 0.0, %v651
      %v653 = vpop.f32.mrf.mxu0
      %654 = vmatprep.mubr.f32.mxu0 0.0
      %655 = vmatmul.mubr.f32.gmra.mxu0 %v579
      %v656 = vpop.f32.mrf.mxu0
      %v657 = vadd.f32 0.0, %v656
      %v658 = vpop.f32.mrf.mxu0
      %659 = vdwg.mxu0
      %v660 = vld [vmem:[%s2] sm:$0xff]
      %v661 = vld [vmem:[%s2 + $0x8] sm:$0xff]
      %v662 = vld [vmem:[%s2 + $0x10] sm:$0x3]
      %s663 = scalar_lea.vmem %s1, 72
      %v664 = vld [vmem:[%s663] sm:$0xff]
      %v665 = vld [vmem:[%s663 + $0x8] sm:$0xff]
      %v666 = vld [vmem:[%s663 + $0x10] sm:$0xff]
      %v667 = vld [vmem:[%s663 + $0x18] sm:$0xff]
      %v668 = vld [vmem:[%s663 + $0x20] sm:$0xff]
      %v669 = vld [vmem:[%s663 + $0x28] sm:$0xff]
      %v670 = vld [vmem:[%s663 + $0x30] sm:$0xff]
      %v671 = vld [vmem:[%s663 + $0x38] sm:$0xff]
      %v672 = vld [vmem:[%s663 + $0x40] sm:$0xff]
      %673 = vmatprep.subr.mxu0 0.0
      %674 = vmatpush1.msra.mxu0 0.0
      %675 = vmatprep.subr.mxu0 0.0
      %676 = vmatpush1.msra.mxu0 0.0
      %677 = vmatprep.subr.mxu0 0.0
      %678 = vmatpush1.msra.mxu0 0.0
      %679 = vmatprep.subr.mxu0 0.0
      %680 = vmatpush1.msra.mxu0 0.0
      %681 = vmatprep.subr.mxu0 0.0
      %682 = vmatpush1.msra.mxu0 0.0
      %683 = vmatprep.subr.mxu0 0.0
      %684 = vmatpush1.msra.mxu0 0.0
      %685 = vmatprep.subr.mxu0 0.0
      %686 = vmatpush1.msra.mxu0 0.0
      %687 = vmatprep.subr.mxu0 0.0
      %688 = vmatpush1.msra.mxu0 %v672
      %689 = vmatprep.subr.mxu0 0.0
      %690 = vmatpush1.msra.mxu0 %v671
      %691 = vmatprep.subr.mxu0 0.0
      %692 = vmatpush1.msra.mxu0 %v670
      %693 = vmatprep.subr.mxu0 0.0
      %694 = vmatpush1.msra.mxu0 %v669
      %695 = vmatprep.subr.mxu0 0.0
      %696 = vmatpush1.msra.mxu0 %v668
      %697 = vmatprep.subr.mxu0 0.0
      %698 = vmatpush1.msra.mxu0 %v667
      %699 = vmatprep.subr.mxu0 0.0
      %700 = vmatpush1.msra.mxu0 %v666
      %701 = vmatprep.subr.mxu0 0.0
      %702 = vmatpush1.msra.mxu0 %v665
      %703 = vmatprep.subr.mxu0 0.0
      %704 = vmatpush1.msra.mxu0 %v664
      %705 = vmatprep.subr.mxu0 0.0
      %706 = vmatpush2.msra.mxu0 0.0
      %707 = vmatprep.subr.mxu0 0.0
      %708 = vmatpush2.msra.mxu0 0.0
      %709 = vmatprep.subr.mxu0 0.0
      %710 = vmatpush2.msra.mxu0 0.0
      %711 = vmatprep.subr.mxu0 0.0
      %712 = vmatpush2.msra.mxu0 0.0
      %713 = vmatprep.subr.mxu0 0.0
      %714 = vmatpush2.msra.mxu0 0.0
      %715 = vmatprep.subr.mxu0 0.0
      %716 = vmatpush2.msra.mxu0 0.0
      %717 = vmatprep.subr.mxu0 0.0
      %718 = vmatpush2.msra.mxu0 0.0
      %719 = vmatprep.subr.mxu0 0.0
      %720 = vmatpush2.msra.mxu0 0.0
      %721 = vmatprep.subr.mxu0 0.0
      %722 = vmatpush2.msra.mxu0 0.0
      %723 = vmatprep.subr.mxu0 0.0
      %724 = vmatpush2.msra.mxu0 0.0
      %725 = vmatprep.subr.mxu0 0.0
      %726 = vmatpush2.msra.mxu0 0.0
      %727 = vmatprep.subr.mxu0 0.0
      %728 = vmatpush2.msra.mxu0 0.0
      %729 = vmatprep.subr.mxu0 0.0
      %730 = vmatpush2.msra.mxu0 0.0
      %731 = vmatprep.subr.mxu0 0.0
      %732 = vmatpush2.msra.mxu0 0.0
      %733 = vmatprep.subr.mxu0 0.0
      %734 = vmatpush2.msra.mxu0 0.0
      %735 = vmatprep.subr.mxu0 0.0
      %736 = vmatpush2.msra.mxu0 0.0
      %737 = vmatprep.mubr.f32.mxu0 0.0
      %738 = vmatmul.mubr.f32.gmra.mxu0 %v211
      %v739 = vpop.f32.mrf.mxu0
      %v740 = vadd.f32 0.0, %v739
      %v741 = vpop.f32.mrf.mxu0
      %742 = vmatprep.mubr.f32.mxu0 0.0
      %743 = vmatmul.mubr.f32.gmra.mxu0 %v214
      %v744 = vpop.f32.mrf.mxu0
      %v745 = vadd.f32 0.0, %v744
      %v746 = vpop.f32.mrf.mxu0
      %747 = vdwg.mxu0
      %s748 = scalar_lea.vmem %s1, 360
      %v749 = vld [vmem:[%s748] sm:$0xff]
      %v750 = vld [vmem:[%s748 + $0x8] sm:$0xff]
      %v751 = vld [vmem:[%s748 + $0x10] sm:$0xff]
      %v752 = vld [vmem:[%s748 + $0x18] sm:$0xff]
      %v753 = vld [vmem:[%s748 + $0x20] sm:$0xff]
      %v754 = vld [vmem:[%s748 + $0x28] sm:$0xff]
      %v755 = vld [vmem:[%s748 + $0x30] sm:$0xff]
      %v756 = vld [vmem:[%s748 + $0x38] sm:$0xff]
      %v757 = vld [vmem:[%s748 + $0x40] sm:$0xff]
      %758 = vmatprep.subr.mxu0 0.0
      %759 = vmatpush1.msra.mxu0 0.0
      %760 = vmatprep.subr.mxu0 0.0
      %761 = vmatpush1.msra.mxu0 0.0
      %762 = vmatprep.subr.mxu0 0.0
      %763 = vmatpush1.msra.mxu0 0.0
      %764 = vmatprep.subr.mxu0 0.0
      %765 = vmatpush1.msra.mxu0 0.0
      %766 = vmatprep.subr.mxu0 0.0
      %767 = vmatpush1.msra.mxu0 0.0
      %768 = vmatprep.subr.mxu0 0.0
      %769 = vmatpush1.msra.mxu0 0.0
      %770 = vmatprep.subr.mxu0 0.0
      %771 = vmatpush1.msra.mxu0 0.0
      %772 = vmatprep.subr.mxu0 0.0
      %773 = vmatpush1.msra.mxu0 %v757
      %774 = vmatprep.subr.mxu0 0.0
      %775 = vmatpush1.msra.mxu0 %v756
      %776 = vmatprep.subr.mxu0 0.0
      %777 = vmatpush1.msra.mxu0 %v755
      %778 = vmatprep.subr.mxu0 0.0
      %779 = vmatpush1.msra.mxu0 %v754
      %780 = vmatprep.subr.mxu0 0.0
      %781 = vmatpush1.msra.mxu0 %v753
      %782 = vmatprep.subr.mxu0 0.0
      %783 = vmatpush1.msra.mxu0 %v752
      %784 = vmatprep.subr.mxu0 0.0
      %785 = vmatpush1.msra.mxu0 %v751
      %786 = vmatprep.subr.mxu0 0.0
      %787 = vmatpush1.msra.mxu0 %v750
      %788 = vmatprep.subr.mxu0 0.0
      %789 = vmatpush1.msra.mxu0 %v749
      %790 = vmatprep.subr.mxu0 0.0
      %791 = vmatpush2.msra.mxu0 0.0
      %792 = vmatprep.subr.mxu0 0.0
      %793 = vmatpush2.msra.mxu0 0.0
      %794 = vmatprep.subr.mxu0 0.0
      %795 = vmatpush2.msra.mxu0 0.0
      %796 = vmatprep.subr.mxu0 0.0
      %797 = vmatpush2.msra.mxu0 0.0
      %798 = vmatprep.subr.mxu0 0.0
      %799 = vmatpush2.msra.mxu0 0.0
      %800 = vmatprep.subr.mxu0 0.0
      %801 = vmatpush2.msra.mxu0 0.0
      %802 = vmatprep.subr.mxu0 0.0
      %803 = vmatpush2.msra.mxu0 0.0
      %804 = vmatprep.subr.mxu0 0.0
      %805 = vmatpush2.msra.mxu0 0.0
      %806 = vmatprep.subr.mxu0 0.0
      %807 = vmatpush2.msra.mxu0 0.0
      %808 = vmatprep.subr.mxu0 0.0
      %809 = vmatpush2.msra.mxu0 0.0
      %810 = vmatprep.subr.mxu0 0.0
      %811 = vmatpush2.msra.mxu0 0.0
      %812 = vmatprep.subr.mxu0 0.0
      %813 = vmatpush2.msra.mxu0 0.0
      %814 = vmatprep.subr.mxu0 0.0
      %815 = vmatpush2.msra.mxu0 0.0
      %816 = vmatprep.subr.mxu0 0.0
      %817 = vmatpush2.msra.mxu0 0.0
      %818 = vmatprep.subr.mxu0 0.0
      %819 = vmatpush2.msra.mxu0 0.0
      %820 = vmatprep.subr.mxu0 0.0
      %821 = vmatpush2.msra.mxu0 0.0
      %822 = vmatprep.mubr.f32.mxu0 0.0
      %823 = vmatmul.mubr.f32.gmra.mxu0 %v211
      %v824 = vpop.f32.mrf.mxu0
      %v825 = vadd.f32 0.0, %v824
      %v826 = vpop.f32.mrf.mxu0
      %827 = vmatprep.mubr.f32.mxu0 0.0
      %828 = vmatmul.mubr.f32.gmra.mxu0 %v214
      %v829 = vpop.f32.mrf.mxu0
      %v830 = vadd.f32 0.0, %v829
      %v831 = vpop.f32.mrf.mxu0
      %832 = vdwg.mxu0
      %s833 = scalar_lea.vmem %s1, 648
      %v834 = vld [vmem:[%s833] sm:$0xff]
      %v835 = vld [vmem:[%s833 + $0x8] sm:$0xff]
      %v836 = vld [vmem:[%s833 + $0x10] sm:$0xff]
      %v837 = vld [vmem:[%s833 + $0x18] sm:$0xff]
      %v838 = vld [vmem:[%s833 + $0x20] sm:$0xff]
      %v839 = vld [vmem:[%s833 + $0x28] sm:$0xff]
      %v840 = vld [vmem:[%s833 + $0x30] sm:$0xff]
      %v841 = vld [vmem:[%s833 + $0x38] sm:$0xff]
      %v842 = vld [vmem:[%s833 + $0x40] sm:$0xff]
      %843 = vmatprep.subr.mxu0 0.0
      %844 = vmatpush1.msra.mxu0 0.0
      %845 = vmatprep.subr.mxu0 0.0
      %846 = vmatpush1.msra.mxu0 0.0
      %847 = vmatprep.subr.mxu0 0.0
      %848 = vmatpush1.msra.mxu0 0.0
      %849 = vmatprep.subr.mxu0 0.0
      %850 = vmatpush1.msra.mxu0 0.0
      %851 = vmatprep.subr.mxu0 0.0
      %852 = vmatpush1.msra.mxu0 0.0
      %853 = vmatprep.subr.mxu0 0.0
      %854 = vmatpush1.msra.mxu0 0.0
      %855 = vmatprep.subr.mxu0 0.0
      %856 = vmatpush1.msra.mxu0 0.0
      %857 = vmatprep.subr.mxu0 0.0
      %858 = vmatpush1.msra.mxu0 %v842
      %859 = vmatprep.subr.mxu0 0.0
      %860 = vmatpush1.msra.mxu0 %v841
      %861 = vmatprep.subr.mxu0 0.0
      %862 = vmatpush1.msra.mxu0 %v840
      %863 = vmatprep.subr.mxu0 0.0
      %864 = vmatpush1.msra.mxu0 %v839
      %865 = vmatprep.subr.mxu0 0.0
      %866 = vmatpush1.msra.mxu0 %v838
      %867 = vmatprep.subr.mxu0 0.0
      %868 = vmatpush1.msra.mxu0 %v837
      %869 = vmatprep.subr.mxu0 0.0
      %870 = vmatpush1.msra.mxu0 %v836
      %871 = vmatprep.subr.mxu0 0.0
      %872 = vmatpush1.msra.mxu0 %v835
      %873 = vmatprep.subr.mxu0 0.0
      %874 = vmatpush1.msra.mxu0 %v834
      %875 = vmatprep.subr.mxu0 0.0
      %876 = vmatpush2.msra.mxu0 0.0
      %877 = vmatprep.subr.mxu0 0.0
      %878 = vmatpush2.msra.mxu0 0.0
      %879 = vmatprep.subr.mxu0 0.0
      %880 = vmatpush2.msra.mxu0 0.0
      %881 = vmatprep.subr.mxu0 0.0
      %882 = vmatpush2.msra.mxu0 0.0
      %883 = vmatprep.subr.mxu0 0.0
      %884 = vmatpush2.msra.mxu0 0.0
      %885 = vmatprep.subr.mxu0 0.0
      %886 = vmatpush2.msra.mxu0 0.0
      %887 = vmatprep.subr.mxu0 0.0
      %888 = vmatpush2.msra.mxu0 0.0
      %889 = vmatprep.subr.mxu0 0.0
      %890 = vmatpush2.msra.mxu0 0.0
      %891 = vmatprep.subr.mxu0 0.0
      %892 = vmatpush2.msra.mxu0 0.0
      %893 = vmatprep.subr.mxu0 0.0
      %894 = vmatpush2.msra.mxu0 0.0
      %895 = vmatprep.subr.mxu0 0.0
      %896 = vmatpush2.msra.mxu0 0.0
      %897 = vmatprep.subr.mxu0 0.0
      %898 = vmatpush2.msra.mxu0 0.0
      %899 = vmatprep.subr.mxu0 0.0
      %900 = vmatpush2.msra.mxu0 0.0
      %901 = vmatprep.subr.mxu0 0.0
      %902 = vmatpush2.msra.mxu0 0.0
      %903 = vmatprep.subr.mxu0 0.0
      %904 = vmatpush2.msra.mxu0 0.0
      %905 = vmatprep.subr.mxu0 0.0
      %906 = vmatpush2.msra.mxu0 0.0
      %907 = vmatprep.mubr.f32.mxu0 0.0
      %908 = vmatmul.mubr.f32.gmra.mxu0 %v211
      %v909 = vpop.f32.mrf.mxu0
      %v910 = vadd.f32 0.0, %v909
      %v911 = vpop.f32.mrf.mxu0
      %912 = vmatprep.mubr.f32.mxu0 0.0
      %913 = vmatmul.mubr.f32.gmra.mxu0 %v214
      %v914 = vpop.f32.mrf.mxu0
      %v915 = vadd.f32 0.0, %v914
      %v916 = vpop.f32.mrf.mxu0
      %917 = vdwg.mxu0
      %v919 = vsel %vm461, %v740, 0
      %v922 = vsel %vm461, %v745, 0
      %v925 = vsel %vm461, %v825, 0
      %v928 = vsel %vm461, %v830, 0
      %930 = vmatprep.subr.mxu0 0.0
      %931 = vmatpush1.xpose.msra.mxu0 0.0
      %932 = vmatprep.subr.mxu0 0.0
      %933 = vmatpush1.xpose.msra.mxu0 0.0
      %934 = vmatprep.subr.mxu0 0.0
      %935 = vmatpush1.xpose.msra.mxu0 0.0
      %936 = vmatprep.subr.mxu0 0.0
      %937 = vmatpush1.xpose.msra.mxu0 0.0
      %938 = vmatprep.subr.mxu0 0.0
      %939 = vmatpush1.xpose.msra.mxu0 0.0
      %940 = vmatprep.subr.mxu0 0.0
      %941 = vmatpush1.xpose.msra.mxu0 0.0
      %942 = vmatprep.subr.mxu0 0.0
      %943 = vmatpush1.xpose.msra.mxu0 0.0
      %944 = vmatprep.subr.mxu0 0.0
      %945 = vmatpush1.xpose.msra.mxu0 0.0
      %946 = vmatprep.subr.mxu0 0.0
      %947 = vmatpush1.xpose.msra.mxu0 0.0
      %948 = vmatprep.subr.mxu0 0.0
      %949 = vmatpush1.xpose.msra.mxu0 0.0
      %950 = vmatprep.subr.mxu0 0.0
      %951 = vmatpush1.xpose.msra.mxu0 0.0
      %952 = vmatprep.subr.mxu0 0.0
      %953 = vmatpush1.xpose.msra.mxu0 0.0
      %954 = vmatprep.subr.mxu0 0.0
      %955 = vmatpush1.xpose.msra.mxu0 0.0
      %956 = vmatprep.subr.mxu0 0.0
      %957 = vmatpush1.xpose.msra.mxu0 0.0
      %958 = vmatprep.subr.mxu0 0.0
      %959 = vmatpush1.xpose.msra.mxu0 %v928
      %960 = vmatprep.subr.mxu0 0.0
      %961 = vmatpush1.xpose.msra.mxu0 %v925
      %962 = vmatprep.subr.mxu0 0.0
      %963 = vmatpush2.xpose.msra.mxu0 0.0
      %964 = vmatprep.subr.mxu0 0.0
      %965 = vmatpush2.xpose.msra.mxu0 0.0
      %966 = vmatprep.subr.mxu0 0.0
      %967 = vmatpush2.xpose.msra.mxu0 0.0
      %968 = vmatprep.subr.mxu0 0.0
      %969 = vmatpush2.xpose.msra.mxu0 0.0
      %970 = vmatprep.subr.mxu0 0.0
      %971 = vmatpush2.xpose.msra.mxu0 0.0
      %972 = vmatprep.subr.mxu0 0.0
      %973 = vmatpush2.xpose.msra.mxu0 0.0
      %974 = vmatprep.subr.mxu0 0.0
      %975 = vmatpush2.xpose.msra.mxu0 0.0
      %976 = vmatprep.subr.mxu0 0.0
      %977 = vmatpush2.xpose.msra.mxu0 0.0
      %978 = vmatprep.subr.mxu0 0.0
      %979 = vmatpush2.xpose.msra.mxu0 0.0
      %980 = vmatprep.subr.mxu0 0.0
      %981 = vmatpush2.xpose.msra.mxu0 0.0
      %982 = vmatprep.subr.mxu0 0.0
      %983 = vmatpush2.xpose.msra.mxu0 0.0
      %984 = vmatprep.subr.mxu0 0.0
      %985 = vmatpush2.xpose.msra.mxu0 0.0
      %986 = vmatprep.subr.mxu0 0.0
      %987 = vmatpush2.xpose.msra.mxu0 0.0
      %988 = vmatprep.subr.mxu0 0.0
      %989 = vmatpush2.xpose.msra.mxu0 0.0
      %990 = vmatprep.subr.mxu0 0.0
      %991 = vmatpush2.xpose.msra.mxu0 0.0
      %992 = vmatprep.subr.mxu0 0.0
      %993 = vmatpush2.xpose.msra.mxu0 0.0
      %994 = vmatprep.mubr.f32.mxu0 0.0
      %995 = vmatmul.mubr.f32.gmra.mxu0 %v919
      %v996 = vpop.f32.mrf.mxu0
      %v997 = vadd.f32 0.0, %v996
      %v998 = vpop.f32.mrf.mxu0
      %999 = vmatprep.mubr.f32.mxu0 0.0
      %1000 = vmatmul.mubr.f32.gmra.mxu0 %v922
      %v1001 = vpop.f32.mrf.mxu0
      %v1002 = vadd.f32 0.0, %v1001
      %v1003 = vpop.f32.mrf.mxu0
      %1004 = vdwg.mxu0
      %v1005 = vmul.f32 %v997, 0.23570226
      %v1006 = vmul.f32 %v1002, 0.23570226
      %v1007 = vsel %vm551, %v1005, -inf
      %1008 = vmax.xlane.f32.xlu0 %v1007
      %v1009 = vpop.xlane.xlu0 %1008
      %v1010 = vsel %vm555, %v1006, -inf
      %1011 = vmax.xlane.f32.xlu0 %v1010
      %v1012 = vpop.xlane.xlu0 %1011
      %v1013 = vsub.f32 %v1005, %v1009
      %v1014 = vsub.f32 %v1006, %v1012
      %v1015 = vmul.f32 %v1013, 1.442695
      %v1016 = vpow.pop %v1015
      %v1017 = vmul.f32 %v1014, 1.442695
      %v1018 = vpow.pop %v1017
      %v1019 = vsel %vm551, %v1016, 0.0
      %1020 = vadd.xlane.f32.xlu0 %v1019
      %v1021 = vpop.xlane.xlu0 %1020
      %v1022 = vsel %vm555, %v1018, 0.0
      %1023 = vadd.xlane.f32.xlu0 %v1022
      %v1024 = vpop.xlane.xlu0 %1023
      %v1025 = vrcp.pop %v1021
      %v1026 = vrcp.pop %v1024
      %v1027 = vmul.f32 %v1016, %v1025
      %v1028 = vmul.f32 %v1018, %v1026
      %v1030 = vsel %vm551, %v1027, 0
      %v1033 = vsel %vm551, %v1028, 0
      %v1036 = vsel %vm581, %v915, 0
      %1038 = vmatprep.subr.mxu0 0.0
      %1039 = vmatpush1.msra.mxu0 0.0
      %1040 = vmatprep.subr.mxu0 0.0
      %1041 = vmatpush1.msra.mxu0 0.0
      %1042 = vmatprep.subr.mxu0 0.0
      %1043 = vmatpush1.msra.mxu0 0.0
      %1044 = vmatprep.subr.mxu0 0.0
      %1045 = vmatpush1.msra.mxu0 0.0
      %1046 = vmatprep.subr.mxu0 0.0
      %1047 = vmatpush1.msra.mxu0 0.0
      %1048 = vmatprep.subr.mxu0 0.0
      %1049 = vmatpush1.msra.mxu0 0.0
      %1050 = vmatprep.subr.mxu0 0.0
      %1051 = vmatpush1.msra.mxu0 0.0
      %1052 = vmatprep.subr.mxu0 0.0
      %1053 = vmatpush1.msra.mxu0 0.0
      %1054 = vmatprep.subr.mxu0 0.0
      %1055 = vmatpush1.msra.mxu0 0.0
      %1056 = vmatprep.subr.mxu0 0.0
      %1057 = vmatpush1.msra.mxu0 0.0
      %1058 = vmatprep.subr.mxu0 0.0
      %1059 = vmatpush1.msra.mxu0 0.0
      %1060 = vmatprep.subr.mxu0 0.0
      %1061 = vmatpush1.msra.mxu0 0.0
      %1062 = vmatprep.subr.mxu0 0.0
      %1063 = vmatpush1.msra.mxu0 0.0
      %1064 = vmatprep.subr.mxu0 0.0
      %1065 = vmatpush1.msra.mxu0 0.0
      %1066 = vmatprep.subr.mxu0 0.0
      %1067 = vmatpush1.msra.mxu0 %v1036
      %1068 = vmatprep.subr.mxu0 0.0
      %1069 = vmatpush1.msra.mxu0 %v910
      %1070 = vmatprep.subr.mxu0 0.0
      %1071 = vmatpush2.msra.mxu0 0.0
      %1072 = vmatprep.subr.mxu0 0.0
      %1073 = vmatpush2.msra.mxu0 0.0
      %1074 = vmatprep.subr.mxu0 0.0
      %1075 = vmatpush2.msra.mxu0 0.0
      %1076 = vmatprep.subr.mxu0 0.0
      %1077 = vmatpush2.msra.mxu0 0.0
      %1078 = vmatprep.subr.mxu0 0.0
      %1079 = vmatpush2.msra.mxu0 0.0
      %1080 = vmatprep.subr.mxu0 0.0
      %1081 = vmatpush2.msra.mxu0 0.0
      %1082 = vmatprep.subr.mxu0 0.0
      %1083 = vmatpush2.msra.mxu0 0.0
      %1084 = vmatprep.subr.mxu0 0.0
      %1085 = vmatpush2.msra.mxu0 0.0
      %1086 = vmatprep.subr.mxu0 0.0
      %1087 = vmatpush2.msra.mxu0 0.0
      %1088 = vmatprep.subr.mxu0 0.0
      %1089 = vmatpush2.msra.mxu0 0.0
      %1090 = vmatprep.subr.mxu0 0.0
      %1091 = vmatpush2.msra.mxu0 0.0
      %1092 = vmatprep.subr.mxu0 0.0
      %1093 = vmatpush2.msra.mxu0 0.0
      %1094 = vmatprep.subr.mxu0 0.0
      %1095 = vmatpush2.msra.mxu0 0.0
      %1096 = vmatprep.subr.mxu0 0.0
      %1097 = vmatpush2.msra.mxu0 0.0
      %1098 = vmatprep.subr.mxu0 0.0
      %1099 = vmatpush2.msra.mxu0 0.0
      %1100 = vmatprep.subr.mxu0 0.0
      %1101 = vmatpush2.msra.mxu0 0.0
      %1102 = vmatprep.mubr.f32.mxu0 0.0
      %1103 = vmatmul.mubr.f32.gmra.mxu0 %v1030
      %v1104 = vpop.f32.mrf.mxu0
      %v1105 = vadd.f32 0.0, %v1104
      %v1106 = vpop.f32.mrf.mxu0
      %1107 = vmatprep.mubr.f32.mxu0 0.0
      %1108 = vmatmul.mubr.f32.gmra.mxu0 %v1033
      %v1109 = vpop.f32.mrf.mxu0
      %v1110 = vadd.f32 0.0, %v1109
      %v1111 = vpop.f32.mrf.mxu0
      %1112 = vdwg.mxu0
      %s1113 = scalar_lea.vmem %s2, 24
      %v1114 = vld [vmem:[%s1113] sm:$0xff]
      %v1115 = vld [vmem:[%s1113 + $0x8] sm:$0xff]
      %v1116 = vld [vmem:[%s1113 + $0x10] sm:$0x3]
      %v1118 = vsel %vm461, %v1105, 0
      %v1121 = vsel %vm461, %v1110, 0
      %vm1123 = vcmask 1041408
      %v1125 = vsel %vm1123, %v1116, 0
      %1127 = vmatprep.subr.mxu0 0.0
      %1128 = vmatpush1.msra.mxu0 0.0
      %1129 = vmatprep.subr.mxu0 0.0
      %1130 = vmatpush1.msra.mxu0 0.0
      %1131 = vmatprep.subr.mxu0 0.0
      %1132 = vmatpush1.msra.mxu0 0.0
      %1133 = vmatprep.subr.mxu0 0.0
      %1134 = vmatpush1.msra.mxu0 0.0
      %1135 = vmatprep.subr.mxu0 0.0
      %1136 = vmatpush1.msra.mxu0 0.0
      %1137 = vmatprep.subr.mxu0 0.0
      %1138 = vmatpush1.msra.mxu0 0.0
      %1139 = vmatprep.subr.mxu0 0.0
      %1140 = vmatpush1.msra.mxu0 0.0
      %1141 = vmatprep.subr.mxu0 0.0
      %1142 = vmatpush1.msra.mxu0 0.0
      %1143 = vmatprep.subr.mxu0 0.0
      %1144 = vmatpush1.msra.mxu0 0.0
      %1145 = vmatprep.subr.mxu0 0.0
      %1146 = vmatpush1.msra.mxu0 0.0
      %1147 = vmatprep.subr.mxu0 0.0
      %1148 = vmatpush1.msra.mxu0 0.0
      %1149 = vmatprep.subr.mxu0 0.0
      %1150 = vmatpush1.msra.mxu0 0.0
      %1151 = vmatprep.subr.mxu0 0.0
      %1152 = vmatpush1.msra.mxu0 0.0
      %1153 = vmatprep.subr.mxu0 0.0
      %1154 = vmatpush1.msra.mxu0 %v1125
      %1155 = vmatprep.subr.mxu0 0.0
      %1156 = vmatpush1.msra.mxu0 %v1115
      %1157 = vmatprep.subr.mxu0 0.0
      %1158 = vmatpush1.msra.mxu0 %v1114
      %1159 = vmatprep.subr.mxu0 0.0
      %1160 = vmatpush2.msra.mxu0 0.0
      %1161 = vmatprep.subr.mxu0 0.0
      %1162 = vmatpush2.msra.mxu0 0.0
      %1163 = vmatprep.subr.mxu0 0.0
      %1164 = vmatpush2.msra.mxu0 0.0
      %1165 = vmatprep.subr.mxu0 0.0
      %1166 = vmatpush2.msra.mxu0 0.0
      %1167 = vmatprep.subr.mxu0 0.0
      %1168 = vmatpush2.msra.mxu0 0.0
      %1169 = vmatprep.subr.mxu0 0.0
      %1170 = vmatpush2.msra.mxu0 0.0
      %1171 = vmatprep.subr.mxu0 0.0
      %1172 = vmatpush2.msra.mxu0 0.0
      %1173 = vmatprep.subr.mxu0 0.0
      %1174 = vmatpush2.msra.mxu0 0.0
      %1175 = vmatprep.subr.mxu0 0.0
      %1176 = vmatpush2.msra.mxu0 0.0
      %1177 = vmatprep.subr.mxu0 0.0
      %1178 = vmatpush2.msra.mxu0 0.0
      %1179 = vmatprep.subr.mxu0 0.0
      %1180 = vmatpush2.msra.mxu0 0.0
      %1181 = vmatprep.subr.mxu0 0.0
      %1182 = vmatpush2.msra.mxu0 0.0
      %1183 = vmatprep.subr.mxu0 0.0
      %1184 = vmatpush2.msra.mxu0 0.0
      %1185 = vmatprep.subr.mxu0 0.0
      %1186 = vmatpush2.msra.mxu0 0.0
      %1187 = vmatprep.subr.mxu0 0.0
      %1188 = vmatpush2.msra.mxu0 0.0
      %1189 = vmatprep.subr.mxu0 0.0
      %1190 = vmatpush2.msra.mxu0 0.0
      %1191 = vmatprep.mubr.f32.mxu0 0.0
      %1192 = vmatmul.mubr.f32.gmra.mxu0 %v1118
      %v1193 = vpop.f32.mrf.mxu0
      %v1194 = vadd.f32 0.0, %v1193
      %v1195 = vpop.f32.mrf.mxu0
      %1196 = vmatprep.mubr.f32.mxu0 0.0
      %1197 = vmatmul.mubr.f32.gmra.mxu0 %v1121
      %v1198 = vpop.f32.mrf.mxu0
      %v1199 = vadd.f32 0.0, %v1198
      %v1200 = vpop.f32.mrf.mxu0
      %1201 = vdwg.mxu0
      %v1203 = vsel %vm461, %v652, 0
      %v1206 = vsel %vm461, %v657, 0
      %v1209 = vsel %vm1123, %v662, 0
      %1211 = vmatprep.subr.mxu0 0.0
      %1212 = vmatpush1.msra.mxu0 0.0
      %1213 = vmatprep.subr.mxu0 0.0
      %1214 = vmatpush1.msra.mxu0 0.0
      %1215 = vmatprep.subr.mxu0 0.0
      %1216 = vmatpush1.msra.mxu0 0.0
      %1217 = vmatprep.subr.mxu0 0.0
      %1218 = vmatpush1.msra.mxu0 0.0
      %1219 = vmatprep.subr.mxu0 0.0
      %1220 = vmatpush1.msra.mxu0 0.0
      %1221 = vmatprep.subr.mxu0 0.0
      %1222 = vmatpush1.msra.mxu0 0.0
      %1223 = vmatprep.subr.mxu0 0.0
      %1224 = vmatpush1.msra.mxu0 0.0
      %1225 = vmatprep.subr.mxu0 0.0
      %1226 = vmatpush1.msra.mxu0 0.0
      %1227 = vmatprep.subr.mxu0 0.0
      %1228 = vmatpush1.msra.mxu0 0.0
      %1229 = vmatprep.subr.mxu0 0.0
      %1230 = vmatpush1.msra.mxu0 0.0
      %1231 = vmatprep.subr.mxu0 0.0
      %1232 = vmatpush1.msra.mxu0 0.0
      %1233 = vmatprep.subr.mxu0 0.0
      %1234 = vmatpush1.msra.mxu0 0.0
      %1235 = vmatprep.subr.mxu0 0.0
      %1236 = vmatpush1.msra.mxu0 0.0
      %1237 = vmatprep.subr.mxu0 0.0
      %1238 = vmatpush1.msra.mxu0 %v1209
      %1239 = vmatprep.subr.mxu0 0.0
      %1240 = vmatpush1.msra.mxu0 %v661
      %1241 = vmatprep.subr.mxu0 0.0
      %1242 = vmatpush1.msra.mxu0 %v660
      %1243 = vmatprep.subr.mxu0 0.0
      %1244 = vmatpush2.msra.mxu0 0.0
      %1245 = vmatprep.subr.mxu0 0.0
      %1246 = vmatpush2.msra.mxu0 0.0
      %1247 = vmatprep.subr.mxu0 0.0
      %1248 = vmatpush2.msra.mxu0 0.0
      %1249 = vmatprep.subr.mxu0 0.0
      %1250 = vmatpush2.msra.mxu0 0.0
      %1251 = vmatprep.subr.mxu0 0.0
      %1252 = vmatpush2.msra.mxu0 0.0
      %1253 = vmatprep.subr.mxu0 0.0
      %1254 = vmatpush2.msra.mxu0 0.0
      %1255 = vmatprep.subr.mxu0 0.0
      %1256 = vmatpush2.msra.mxu0 0.0
      %1257 = vmatprep.subr.mxu0 0.0
      %1258 = vmatpush2.msra.mxu0 0.0
      %1259 = vmatprep.subr.mxu0 0.0
      %1260 = vmatpush2.msra.mxu0 0.0
      %1261 = vmatprep.subr.mxu0 0.0
      %1262 = vmatpush2.msra.mxu0 0.0
      %1263 = vmatprep.subr.mxu0 0.0
      %1264 = vmatpush2.msra.mxu0 0.0
      %1265 = vmatprep.subr.mxu0 0.0
      %1266 = vmatpush2.msra.mxu0 0.0
      %1267 = vmatprep.subr.mxu0 0.0
      %1268 = vmatpush2.msra.mxu0 0.0
      %1269 = vmatprep.subr.mxu0 0.0
      %1270 = vmatpush2.msra.mxu0 0.0
      %1271 = vmatprep.subr.mxu0 0.0
      %1272 = vmatpush2.msra.mxu0 0.0
      %1273 = vmatprep.subr.mxu0 0.0
      %1274 = vmatpush2.msra.mxu0 0.0
      %1275 = vmatprep.mubr.f32.mxu0 0.0
      %1276 = vmatmul.mubr.f32.gmra.mxu0 %v1203
      %v1277 = vpop.f32.mrf.mxu0
      %v1278 = vadd.f32 %v1194, %v1277
      %v1279 = vpop.f32.mrf.mxu0
      %1280 = vmatprep.mubr.f32.mxu0 0.0
      %1281 = vmatmul.mubr.f32.gmra.mxu0 %v1206
      %v1282 = vpop.f32.mrf.mxu0
      %v1283 = vadd.f32 %v1199, %v1282
      %v1284 = vpop.f32.mrf.mxu0
      %1285 = vdwg.mxu0
      %s1286 = scalar_lea.vmem %s1, 144
      %v1287 = vld [vmem:[%s1286] sm:$0xff]
      %v1288 = vld [vmem:[%s1286 + $0x8] sm:$0xff]
      %v1289 = vld [vmem:[%s1286 + $0x10] sm:$0xff]
      %v1290 = vld [vmem:[%s1286 + $0x18] sm:$0xff]
      %v1291 = vld [vmem:[%s1286 + $0x20] sm:$0xff]
      %v1292 = vld [vmem:[%s1286 + $0x28] sm:$0xff]
      %v1293 = vld [vmem:[%s1286 + $0x30] sm:$0xff]
      %v1294 = vld [vmem:[%s1286 + $0x38] sm:$0xff]
      %v1295 = vld [vmem:[%s1286 + $0x40] sm:$0xff]
      %1296 = vmatprep.subr.mxu0 0.0
      %1297 = vmatpush1.msra.mxu0 0.0
      %1298 = vmatprep.subr.mxu0 0.0
      %1299 = vmatpush1.msra.mxu0 0.0
      %1300 = vmatprep.subr.mxu0 0.0
      %1301 = vmatpush1.msra.mxu0 0.0
      %1302 = vmatprep.subr.mxu0 0.0
      %1303 = vmatpush1.msra.mxu0 0.0
      %1304 = vmatprep.subr.mxu0 0.0
      %1305 = vmatpush1.msra.mxu0 0.0
      %1306 = vmatprep.subr.mxu0 0.0
      %1307 = vmatpush1.msra.mxu0 0.0
      %1308 = vmatprep.subr.mxu0 0.0
      %1309 = vmatpush1.msra.mxu0 0.0
      %1310 = vmatprep.subr.mxu0 0.0
      %1311 = vmatpush1.msra.mxu0 %v1295
      %1312 = vmatprep.subr.mxu0 0.0
      %1313 = vmatpush1.msra.mxu0 %v1294
      %1314 = vmatprep.subr.mxu0 0.0
      %1315 = vmatpush1.msra.mxu0 %v1293
      %1316 = vmatprep.subr.mxu0 0.0
      %1317 = vmatpush1.msra.mxu0 %v1292
      %1318 = vmatprep.subr.mxu0 0.0
      %1319 = vmatpush1.msra.mxu0 %v1291
      %1320 = vmatprep.subr.mxu0 0.0
      %1321 = vmatpush1.msra.mxu0 %v1290
      %1322 = vmatprep.subr.mxu0 0.0
      %1323 = vmatpush1.msra.mxu0 %v1289
      %1324 = vmatprep.subr.mxu0 0.0
      %1325 = vmatpush1.msra.mxu0 %v1288
      %1326 = vmatprep.subr.mxu0 0.0
      %1327 = vmatpush1.msra.mxu0 %v1287
      %1328 = vmatprep.subr.mxu0 0.0
      %1329 = vmatpush2.msra.mxu0 0.0
      %1330 = vmatprep.subr.mxu0 0.0
      %1331 = vmatpush2.msra.mxu0 0.0
      %1332 = vmatprep.subr.mxu0 0.0
      %1333 = vmatpush2.msra.mxu0 0.0
      %1334 = vmatprep.subr.mxu0 0.0
      %1335 = vmatpush2.msra.mxu0 0.0
      %1336 = vmatprep.subr.mxu0 0.0
      %1337 = vmatpush2.msra.mxu0 0.0
      %1338 = vmatprep.subr.mxu0 0.0
      %1339 = vmatpush2.msra.mxu0 0.0
      %1340 = vmatprep.subr.mxu0 0.0
      %1341 = vmatpush2.msra.mxu0 0.0
      %1342 = vmatprep.subr.mxu0 0.0
      %1343 = vmatpush2.msra.mxu0 0.0
      %1344 = vmatprep.subr.mxu0 0.0
      %1345 = vmatpush2.msra.mxu0 0.0
      %1346 = vmatprep.subr.mxu0 0.0
      %1347 = vmatpush2.msra.mxu0 0.0
      %1348 = vmatprep.subr.mxu0 0.0
      %1349 = vmatpush2.msra.mxu0 0.0
      %1350 = vmatprep.subr.mxu0 0.0
      %1351 = vmatpush2.msra.mxu0 0.0
      %1352 = vmatprep.subr.mxu0 0.0
      %1353 = vmatpush2.msra.mxu0 0.0
      %1354 = vmatprep.subr.mxu0 0.0
      %1355 = vmatpush2.msra.mxu0 0.0
      %1356 = vmatprep.subr.mxu0 0.0
      %1357 = vmatpush2.msra.mxu0 0.0
      %1358 = vmatprep.subr.mxu0 0.0
      %1359 = vmatpush2.msra.mxu0 0.0
      %1360 = vmatprep.mubr.f32.mxu0 0.0
      %1361 = vmatmul.mubr.f32.gmra.mxu0 %v211
      %v1362 = vpop.f32.mrf.mxu0
      %v1363 = vadd.f32 0.0, %v1362
      %v1364 = vpop.f32.mrf.mxu0
      %1365 = vmatprep.mubr.f32.mxu0 0.0
      %1366 = vmatmul.mubr.f32.gmra.mxu0 %v214
      %v1367 = vpop.f32.mrf.mxu0
      %v1368 = vadd.f32 0.0, %v1367
      %v1369 = vpop.f32.mrf.mxu0
      %1370 = vdwg.mxu0
      %s1371 = scalar_lea.vmem %s1, 432
      %v1372 = vld [vmem:[%s1371] sm:$0xff]
      %v1373 = vld [vmem:[%s1371 + $0x8] sm:$0xff]
      %v1374 = vld [vmem:[%s1371 + $0x10] sm:$0xff]
      %v1375 = vld [vmem:[%s1371 + $0x18] sm:$0xff]
      %v1376 = vld [vmem:[%s1371 + $0x20] sm:$0xff]
      %v1377 = vld [vmem:[%s1371 + $0x28] sm:$0xff]
      %v1378 = vld [vmem:[%s1371 + $0x30] sm:$0xff]
      %v1379 = vld [vmem:[%s1371 + $0x38] sm:$0xff]
      %v1380 = vld [vmem:[%s1371 + $0x40] sm:$0xff]
      %1381 = vmatprep.subr.mxu0 0.0
      %1382 = vmatpush1.msra.mxu0 0.0
      %1383 = vmatprep.subr.mxu0 0.0
      %1384 = vmatpush1.msra.mxu0 0.0
      %1385 = vmatprep.subr.mxu0 0.0
      %1386 = vmatpush1.msra.mxu0 0.0
      %1387 = vmatprep.subr.mxu0 0.0
      %1388 = vmatpush1.msra.mxu0 0.0
      %1389 = vmatprep.subr.mxu0 0.0
      %1390 = vmatpush1.msra.mxu0 0.0
      %1391 = vmatprep.subr.mxu0 0.0
      %1392 = vmatpush1.msra.mxu0 0.0
      %1393 = vmatprep.subr.mxu0 0.0
      %1394 = vmatpush1.msra.mxu0 0.0
      %1395 = vmatprep.subr.mxu0 0.0
      %1396 = vmatpush1.msra.mxu0 %v1380
      %1397 = vmatprep.subr.mxu0 0.0
      %1398 = vmatpush1.msra.mxu0 %v1379
      %1399 = vmatprep.subr.mxu0 0.0
      %1400 = vmatpush1.msra.mxu0 %v1378
      %1401 = vmatprep.subr.mxu0 0.0
      %1402 = vmatpush1.msra.mxu0 %v1377
      %1403 = vmatprep.subr.mxu0 0.0
      %1404 = vmatpush1.msra.mxu0 %v1376
      %1405 = vmatprep.subr.mxu0 0.0
      %1406 = vmatpush1.msra.mxu0 %v1375
      %1407 = vmatprep.subr.mxu0 0.0
      %1408 = vmatpush1.msra.mxu0 %v1374
      %1409 = vmatprep.subr.mxu0 0.0
      %1410 = vmatpush1.msra.mxu0 %v1373
      %1411 = vmatprep.subr.mxu0 0.0
      %1412 = vmatpush1.msra.mxu0 %v1372
      %1413 = vmatprep.subr.mxu0 0.0
      %1414 = vmatpush2.msra.mxu0 0.0
      %1415 = vmatprep.subr.mxu0 0.0
      %1416 = vmatpush2.msra.mxu0 0.0
      %1417 = vmatprep.subr.mxu0 0.0
      %1418 = vmatpush2.msra.mxu0 0.0
      %1419 = vmatprep.subr.mxu0 0.0
      %1420 = vmatpush2.msra.mxu0 0.0
      %1421 = vmatprep.subr.mxu0 0.0
      %1422 = vmatpush2.msra.mxu0 0.0
      %1423 = vmatprep.subr.mxu0 0.0
      %1424 = vmatpush2.msra.mxu0 0.0
      %1425 = vmatprep.subr.mxu0 0.0
      %1426 = vmatpush2.msra.mxu0 0.0
      %1427 = vmatprep.subr.mxu0 0.0
      %1428 = vmatpush2.msra.mxu0 0.0
      %1429 = vmatprep.subr.mxu0 0.0
      %1430 = vmatpush2.msra.mxu0 0.0
      %1431 = vmatprep.subr.mxu0 0.0
      %1432 = vmatpush2.msra.mxu0 0.0
      %1433 = vmatprep.subr.mxu0 0.0
      %1434 = vmatpush2.msra.mxu0 0.0
      %1435 = vmatprep.subr.mxu0 0.0
      %1436 = vmatpush2.msra.mxu0 0.0
      %1437 = vmatprep.subr.mxu0 0.0
      %1438 = vmatpush2.msra.mxu0 0.0
      %1439 = vmatprep.subr.mxu0 0.0
      %1440 = vmatpush2.msra.mxu0 0.0
      %1441 = vmatprep.subr.mxu0 0.0
      %1442 = vmatpush2.msra.mxu0 0.0
      %1443 = vmatprep.subr.mxu0 0.0
      %1444 = vmatpush2.msra.mxu0 0.0
      %1445 = vmatprep.mubr.f32.mxu0 0.0
      %1446 = vmatmul.mubr.f32.gmra.mxu0 %v211
      %v1447 = vpop.f32.mrf.mxu0
      %v1448 = vadd.f32 0.0, %v1447
      %v1449 = vpop.f32.mrf.mxu0
      %1450 = vmatprep.mubr.f32.mxu0 0.0
      %1451 = vmatmul.mubr.f32.gmra.mxu0 %v214
      %v1452 = vpop.f32.mrf.mxu0
      %v1453 = vadd.f32 0.0, %v1452
      %v1454 = vpop.f32.mrf.mxu0
      %1455 = vdwg.mxu0
      %s1456 = scalar_lea.vmem %s1, 720
      %v1457 = vld [vmem:[%s1456] sm:$0xff]
      %v1458 = vld [vmem:[%s1456 + $0x8] sm:$0xff]
      %v1459 = vld [vmem:[%s1456 + $0x10] sm:$0xff]
      %v1460 = vld [vmem:[%s1456 + $0x18] sm:$0xff]
      %v1461 = vld [vmem:[%s1456 + $0x20] sm:$0xff]
      %v1462 = vld [vmem:[%s1456 + $0x28] sm:$0xff]
      %v1463 = vld [vmem:[%s1456 + $0x30] sm:$0xff]
      %v1464 = vld [vmem:[%s1456 + $0x38] sm:$0xff]
      %v1465 = vld [vmem:[%s1456 + $0x40] sm:$0xff]
      %1466 = vmatprep.subr.mxu0 0.0
      %1467 = vmatpush1.msra.mxu0 0.0
      %1468 = vmatprep.subr.mxu0 0.0
      %1469 = vmatpush1.msra.mxu0 0.0
      %1470 = vmatprep.subr.mxu0 0.0
      %1471 = vmatpush1.msra.mxu0 0.0
      %1472 = vmatprep.subr.mxu0 0.0
      %1473 = vmatpush1.msra.mxu0 0.0
      %1474 = vmatprep.subr.mxu0 0.0
      %1475 = vmatpush1.msra.mxu0 0.0
      %1476 = vmatprep.subr.mxu0 0.0
      %1477 = vmatpush1.msra.mxu0 0.0
      %1478 = vmatprep.subr.mxu0 0.0
      %1479 = vmatpush1.msra.mxu0 0.0
      %1480 = vmatprep.subr.mxu0 0.0
      %1481 = vmatpush1.msra.mxu0 %v1465
      %1482 = vmatprep.subr.mxu0 0.0
      %1483 = vmatpush1.msra.mxu0 %v1464
      %1484 = vmatprep.subr.mxu0 0.0
      %1485 = vmatpush1.msra.mxu0 %v1463
      %1486 = vmatprep.subr.mxu0 0.0
      %1487 = vmatpush1.msra.mxu0 %v1462
      %1488 = vmatprep.subr.mxu0 0.0
      %1489 = vmatpush1.msra.mxu0 %v1461
      %1490 = vmatprep.subr.mxu0 0.0
      %1491 = vmatpush1.msra.mxu0 %v1460
      %1492 = vmatprep.subr.mxu0 0.0
      %1493 = vmatpush1.msra.mxu0 %v1459
      %1494 = vmatprep.subr.mxu0 0.0
      %1495 = vmatpush1.msra.mxu0 %v1458
      %1496 = vmatprep.subr.mxu0 0.0
      %1497 = vmatpush1.msra.mxu0 %v1457
      %1498 = vmatprep.subr.mxu0 0.0
      %1499 = vmatpush2.msra.mxu0 0.0
      %1500 = vmatprep.subr.mxu0 0.0
      %1501 = vmatpush2.msra.mxu0 0.0
      %1502 = vmatprep.subr.mxu0 0.0
      %1503 = vmatpush2.msra.mxu0 0.0
      %1504 = vmatprep.subr.mxu0 0.0
      %1505 = vmatpush2.msra.mxu0 0.0
      %1506 = vmatprep.subr.mxu0 0.0
      %1507 = vmatpush2.msra.mxu0 0.0
      %1508 = vmatprep.subr.mxu0 0.0
      %1509 = vmatpush2.msra.mxu0 0.0
      %1510 = vmatprep.subr.mxu0 0.0
      %1511 = vmatpush2.msra.mxu0 0.0
      %1512 = vmatprep.subr.mxu0 0.0
      %1513 = vmatpush2.msra.mxu0 0.0
      %1514 = vmatprep.subr.mxu0 0.0
      %1515 = vmatpush2.msra.mxu0 0.0
      %1516 = vmatprep.subr.mxu0 0.0
      %1517 = vmatpush2.msra.mxu0 0.0
      %1518 = vmatprep.subr.mxu0 0.0
      %1519 = vmatpush2.msra.mxu0 0.0
      %1520 = vmatprep.subr.mxu0 0.0
      %1521 = vmatpush2.msra.mxu0 0.0
      %1522 = vmatprep.subr.mxu0 0.0
      %1523 = vmatpush2.msra.mxu0 0.0
      %1524 = vmatprep.subr.mxu0 0.0
      %1525 = vmatpush2.msra.mxu0 0.0
      %1526 = vmatprep.subr.mxu0 0.0
      %1527 = vmatpush2.msra.mxu0 0.0
      %1528 = vmatprep.subr.mxu0 0.0
      %1529 = vmatpush2.msra.mxu0 0.0
      %1530 = vmatprep.mubr.f32.mxu0 0.0
      %1531 = vmatmul.mubr.f32.gmra.mxu0 %v211
      %v1532 = vpop.f32.mrf.mxu0
      %v1533 = vadd.f32 0.0, %v1532
      %v1534 = vpop.f32.mrf.mxu0
      %1535 = vmatprep.mubr.f32.mxu0 0.0
      %1536 = vmatmul.mubr.f32.gmra.mxu0 %v214
      %v1537 = vpop.f32.mrf.mxu0
      %v1538 = vadd.f32 0.0, %v1537
      %v1539 = vpop.f32.mrf.mxu0
      %1540 = vdwg.mxu0
      %v1542 = vsel %vm461, %v1363, 0
      %v1545 = vsel %vm461, %v1368, 0
      %v1548 = vsel %vm461, %v1448, 0
      %v1551 = vsel %vm461, %v1453, 0
      %1553 = vmatprep.subr.mxu0 0.0
      %1554 = vmatpush1.xpose.msra.mxu0 0.0
      %1555 = vmatprep.subr.mxu0 0.0
      %1556 = vmatpush1.xpose.msra.mxu0 0.0
      %1557 = vmatprep.subr.mxu0 0.0
      %1558 = vmatpush1.xpose.msra.mxu0 0.0
      %1559 = vmatprep.subr.mxu0 0.0
      %1560 = vmatpush1.xpose.msra.mxu0 0.0
      %1561 = vmatprep.subr.mxu0 0.0
      %1562 = vmatpush1.xpose.msra.mxu0 0.0
      %1563 = vmatprep.subr.mxu0 0.0
      %1564 = vmatpush1.xpose.msra.mxu0 0.0
      %1565 = vmatprep.subr.mxu0 0.0
      %1566 = vmatpush1.xpose.msra.mxu0 0.0
      %1567 = vmatprep.subr.mxu0 0.0
      %1568 = vmatpush1.xpose.msra.mxu0 0.0
      %1569 = vmatprep.subr.mxu0 0.0
      %1570 = vmatpush1.xpose.msra.mxu0 0.0
      %1571 = vmatprep.subr.mxu0 0.0
      %1572 = vmatpush1.xpose.msra.mxu0 0.0
      %1573 = vmatprep.subr.mxu0 0.0
      %1574 = vmatpush1.xpose.msra.mxu0 0.0
      %1575 = vmatprep.subr.mxu0 0.0
      %1576 = vmatpush1.xpose.msra.mxu0 0.0
      %1577 = vmatprep.subr.mxu0 0.0
      %1578 = vmatpush1.xpose.msra.mxu0 0.0
      %1579 = vmatprep.subr.mxu0 0.0
      %1580 = vmatpush1.xpose.msra.mxu0 0.0
      %1581 = vmatprep.subr.mxu0 0.0
      %1582 = vmatpush1.xpose.msra.mxu0 %v1551
      %1583 = vmatprep.subr.mxu0 0.0
      %1584 = vmatpush1.xpose.msra.mxu0 %v1548
      %1585 = vmatprep.subr.mxu0 0.0
      %1586 = vmatpush2.xpose.msra.mxu0 0.0
      %1587 = vmatprep.subr.mxu0 0.0
      %1588 = vmatpush2.xpose.msra.mxu0 0.0
      %1589 = vmatprep.subr.mxu0 0.0
      %1590 = vmatpush2.xpose.msra.mxu0 0.0
      %1591 = vmatprep.subr.mxu0 0.0
      %1592 = vmatpush2.xpose.msra.mxu0 0.0
      %1593 = vmatprep.subr.mxu0 0.0
      %1594 = vmatpush2.xpose.msra.mxu0 0.0
      %1595 = vmatprep.subr.mxu0 0.0
      %1596 = vmatpush2.xpose.msra.mxu0 0.0
      %1597 = vmatprep.subr.mxu0 0.0
      %1598 = vmatpush2.xpose.msra.mxu0 0.0
      %1599 = vmatprep.subr.mxu0 0.0
      %1600 = vmatpush2.xpose.msra.mxu0 0.0
      %1601 = vmatprep.subr.mxu0 0.0
      %1602 = vmatpush2.xpose.msra.mxu0 0.0
      %1603 = vmatprep.subr.mxu0 0.0
      %1604 = vmatpush2.xpose.msra.mxu0 0.0
      %1605 = vmatprep.subr.mxu0 0.0
      %1606 = vmatpush2.xpose.msra.mxu0 0.0
      %1607 = vmatprep.subr.mxu0 0.0
      %1608 = vmatpush2.xpose.msra.mxu0 0.0
      %1609 = vmatprep.subr.mxu0 0.0
      %1610 = vmatpush2.xpose.msra.mxu0 0.0
      %1611 = vmatprep.subr.mxu0 0.0
      %1612 = vmatpush2.xpose.msra.mxu0 0.0
      %1613 = vmatprep.subr.mxu0 0.0
      %1614 = vmatpush2.xpose.msra.mxu0 0.0
      %1615 = vmatprep.subr.mxu0 0.0
      %1616 = vmatpush2.xpose.msra.mxu0 0.0
      %1617 = vmatprep.mubr.f32.mxu0 0.0
      %1618 = vmatmul.mubr.f32.gmra.mxu0 %v1542
      %v1619 = vpop.f32.mrf.mxu0
      %v1620 = vadd.f32 0.0, %v1619
      %v1621 = vpop.f32.mrf.mxu0
      %1622 = vmatprep.mubr.f32.mxu0 0.0
      %1623 = vmatmul.mubr.f32.gmra.mxu0 %v1545
      %v1624 = vpop.f32.mrf.mxu0
      %v1625 = vadd.f32 0.0, %v1624
      %v1626 = vpop.f32.mrf.mxu0
      %1627 = vdwg.mxu0
      %v1628 = vmul.f32 %v1620, 0.23570226
      %v1629 = vmul.f32 %v1625, 0.23570226
      %v1630 = vsel %vm551, %v1628, -inf
      %1631 = vmax.xlane.f32.xlu0 %v1630
      %v1632 = vpop.xlane.xlu0 %1631
      %v1633 = vsel %vm555, %v1629, -inf
      %1634 = vmax.xlane.f32.xlu0 %v1633
      %v1635 = vpop.xlane.xlu0 %1634
      %v1636 = vsub.f32 %v1628, %v1632
      %v1637 = vsub.f32 %v1629, %v1635
      %v1638 = vmul.f32 %v1636, 1.442695
      %v1639 = vpow.pop %v1638
      %v1640 = vmul.f32 %v1637, 1.442695
      %v1641 = vpow.pop %v1640
      %v1642 = vsel %vm551, %v1639, 0.0
      %1643 = vadd.xlane.f32.xlu0 %v1642
      %v1644 = vpop.xlane.xlu0 %1643
      %v1645 = vsel %vm555, %v1641, 0.0
      %1646 = vadd.xlane.f32.xlu0 %v1645
      %v1647 = vpop.xlane.xlu0 %1646
      %v1648 = vrcp.pop %v1644
      %v1649 = vrcp.pop %v1647
      %v1650 = vmul.f32 %v1639, %v1648
      %v1651 = vmul.f32 %v1641, %v1649
      %v1653 = vsel %vm551, %v1650, 0
      %v1656 = vsel %vm551, %v1651, 0
      %v1659 = vsel %vm581, %v1538, 0
      %1661 = vmatprep.subr.mxu0 0.0
      %1662 = vmatpush1.msra.mxu0 0.0
      %1663 = vmatprep.subr.mxu0 0.0
      %1664 = vmatpush1.msra.mxu0 0.0
      %1665 = vmatprep.subr.mxu0 0.0
      %1666 = vmatpush1.msra.mxu0 0.0
      %1667 = vmatprep.subr.mxu0 0.0
      %1668 = vmatpush1.msra.mxu0 0.0
      %1669 = vmatprep.subr.mxu0 0.0
      %1670 = vmatpush1.msra.mxu0 0.0
      %1671 = vmatprep.subr.mxu0 0.0
      %1672 = vmatpush1.msra.mxu0 0.0
      %1673 = vmatprep.subr.mxu0 0.0
      %1674 = vmatpush1.msra.mxu0 0.0
      %1675 = vmatprep.subr.mxu0 0.0
      %1676 = vmatpush1.msra.mxu0 0.0
      %1677 = vmatprep.subr.mxu0 0.0
      %1678 = vmatpush1.msra.mxu0 0.0
      %1679 = vmatprep.subr.mxu0 0.0
      %1680 = vmatpush1.msra.mxu0 0.0
      %1681 = vmatprep.subr.mxu0 0.0
      %1682 = vmatpush1.msra.mxu0 0.0
      %1683 = vmatprep.subr.mxu0 0.0
      %1684 = vmatpush1.msra.mxu0 0.0
      %1685 = vmatprep.subr.mxu0 0.0
      %1686 = vmatpush1.msra.mxu0 0.0
      %1687 = vmatprep.subr.mxu0 0.0
      %1688 = vmatpush1.msra.mxu0 0.0
      %1689 = vmatprep.subr.mxu0 0.0
      %1690 = vmatpush1.msra.mxu0 %v1659
      %1691 = vmatprep.subr.mxu0 0.0
      %1692 = vmatpush1.msra.mxu0 %v1533
      %1693 = vmatprep.subr.mxu0 0.0
      %1694 = vmatpush2.msra.mxu0 0.0
      %1695 = vmatprep.subr.mxu0 0.0
      %1696 = vmatpush2.msra.mxu0 0.0
      %1697 = vmatprep.subr.mxu0 0.0
      %1698 = vmatpush2.msra.mxu0 0.0
      %1699 = vmatprep.subr.mxu0 0.0
      %1700 = vmatpush2.msra.mxu0 0.0
      %1701 = vmatprep.subr.mxu0 0.0
      %1702 = vmatpush2.msra.mxu0 0.0
      %1703 = vmatprep.subr.mxu0 0.0
      %1704 = vmatpush2.msra.mxu0 0.0
      %1705 = vmatprep.subr.mxu0 0.0
      %1706 = vmatpush2.msra.mxu0 0.0
      %1707 = vmatprep.subr.mxu0 0.0
      %1708 = vmatpush2.msra.mxu0 0.0
      %1709 = vmatprep.subr.mxu0 0.0
      %1710 = vmatpush2.msra.mxu0 0.0
      %1711 = vmatprep.subr.mxu0 0.0
      %1712 = vmatpush2.msra.mxu0 0.0
      %1713 = vmatprep.subr.mxu0 0.0
      %1714 = vmatpush2.msra.mxu0 0.0
      %1715 = vmatprep.subr.mxu0 0.0
      %1716 = vmatpush2.msra.mxu0 0.0
      %1717 = vmatprep.subr.mxu0 0.0
      %1718 = vmatpush2.msra.mxu0 0.0
      %1719 = vmatprep.subr.mxu0 0.0
      %1720 = vmatpush2.msra.mxu0 0.0
      %1721 = vmatprep.subr.mxu0 0.0
      %1722 = vmatpush2.msra.mxu0 0.0
      %1723 = vmatprep.subr.mxu0 0.0
      %1724 = vmatpush2.msra.mxu0 0.0
      %1725 = vmatprep.mubr.f32.mxu0 0.0
      %1726 = vmatmul.mubr.f32.gmra.mxu0 %v1653
      %v1727 = vpop.f32.mrf.mxu0
      %v1728 = vadd.f32 0.0, %v1727
      %v1729 = vpop.f32.mrf.mxu0
      %1730 = vmatprep.mubr.f32.mxu0 0.0
      %1731 = vmatmul.mubr.f32.gmra.mxu0 %v1656
      %v1732 = vpop.f32.mrf.mxu0
      %v1733 = vadd.f32 0.0, %v1732
      %v1734 = vpop.f32.mrf.mxu0
      %1735 = vdwg.mxu0
      %s1736 = scalar_lea.vmem %s2, 48
      %v1737 = vld [vmem:[%s1736] sm:$0xff]
      %v1738 = vld [vmem:[%s1736 + $0x8] sm:$0xff]
      %v1739 = vld [vmem:[%s1736 + $0x10] sm:$0x3]
      %v1741 = vsel %vm461, %v1728, 0
      %v1744 = vsel %vm461, %v1733, 0
      %v1747 = vsel %vm1123, %v1739, 0
      %1749 = vmatprep.subr.mxu0 0.0
      %1750 = vmatpush1.msra.mxu0 0.0
      %1751 = vmatprep.subr.mxu0 0.0
      %1752 = vmatpush1.msra.mxu0 0.0
      %1753 = vmatprep.subr.mxu0 0.0
      %1754 = vmatpush1.msra.mxu0 0.0
      %1755 = vmatprep.subr.mxu0 0.0
      %1756 = vmatpush1.msra.mxu0 0.0
      %1757 = vmatprep.subr.mxu0 0.0
      %1758 = vmatpush1.msra.mxu0 0.0
      %1759 = vmatprep.subr.mxu0 0.0
      %1760 = vmatpush1.msra.mxu0 0.0
      %1761 = vmatprep.subr.mxu0 0.0
      %1762 = vmatpush1.msra.mxu0 0.0
      %1763 = vmatprep.subr.mxu0 0.0
      %1764 = vmatpush1.msra.mxu0 0.0
      %1765 = vmatprep.subr.mxu0 0.0
      %1766 = vmatpush1.msra.mxu0 0.0
      %1767 = vmatprep.subr.mxu0 0.0
      %1768 = vmatpush1.msra.mxu0 0.0
      %1769 = vmatprep.subr.mxu0 0.0
      %1770 = vmatpush1.msra.mxu0 0.0
      %1771 = vmatprep.subr.mxu0 0.0
      %1772 = vmatpush1.msra.mxu0 0.0
      %1773 = vmatprep.subr.mxu0 0.0
      %1774 = vmatpush1.msra.mxu0 0.0
      %1775 = vmatprep.subr.mxu0 0.0
      %1776 = vmatpush1.msra.mxu0 %v1747
      %1777 = vmatprep.subr.mxu0 0.0
      %1778 = vmatpush1.msra.mxu0 %v1738
      %1779 = vmatprep.subr.mxu0 0.0
      %1780 = vmatpush1.msra.mxu0 %v1737
      %1781 = vmatprep.subr.mxu0 0.0
      %1782 = vmatpush2.msra.mxu0 0.0
      %1783 = vmatprep.subr.mxu0 0.0
      %1784 = vmatpush2.msra.mxu0 0.0
      %1785 = vmatprep.subr.mxu0 0.0
      %1786 = vmatpush2.msra.mxu0 0.0
      %1787 = vmatprep.subr.mxu0 0.0
      %1788 = vmatpush2.msra.mxu0 0.0
      %1789 = vmatprep.subr.mxu0 0.0
      %1790 = vmatpush2.msra.mxu0 0.0
      %1791 = vmatprep.subr.mxu0 0.0
      %1792 = vmatpush2.msra.mxu0 0.0
      %1793 = vmatprep.subr.mxu0 0.0
      %1794 = vmatpush2.msra.mxu0 0.0
      %1795 = vmatprep.subr.mxu0 0.0
      %1796 = vmatpush2.msra.mxu0 0.0
      %1797 = vmatprep.subr.mxu0 0.0
      %1798 = vmatpush2.msra.mxu0 0.0
      %1799 = vmatprep.subr.mxu0 0.0
      %1800 = vmatpush2.msra.mxu0 0.0
      %1801 = vmatprep.subr.mxu0 0.0
      %1802 = vmatpush2.msra.mxu0 0.0
      %1803 = vmatprep.subr.mxu0 0.0
      %1804 = vmatpush2.msra.mxu0 0.0
      %1805 = vmatprep.subr.mxu0 0.0
      %1806 = vmatpush2.msra.mxu0 0.0
      %1807 = vmatprep.subr.mxu0 0.0
      %1808 = vmatpush2.msra.mxu0 0.0
      %1809 = vmatprep.subr.mxu0 0.0
      %1810 = vmatpush2.msra.mxu0 0.0
      %1811 = vmatprep.subr.mxu0 0.0
      %1812 = vmatpush2.msra.mxu0 0.0
      %1813 = vmatprep.mubr.f32.mxu0 0.0
      %1814 = vmatmul.mubr.f32.gmra.mxu0 %v1741
      %v1815 = vpop.f32.mrf.mxu0
      %v1816 = vadd.f32 0.0, %v1815
      %v1817 = vpop.f32.mrf.mxu0
      %1818 = vmatprep.mubr.f32.mxu0 0.0
      %1819 = vmatmul.mubr.f32.gmra.mxu0 %v1744
      %v1820 = vpop.f32.mrf.mxu0
      %v1821 = vadd.f32 0.0, %v1820
      %v1822 = vpop.f32.mrf.mxu0
      %1823 = vdwg.mxu0
      %v1824 = vadd.f32 %v1278, %v1816
      %v1825 = vadd.f32 %v1283, %v1821
      %s1826 = scalar_lea.vmem %s1, 216
      %v1827 = vld [vmem:[%s1826] sm:$0xff]
      %v1828 = vld [vmem:[%s1826 + $0x8] sm:$0xff]
      %v1829 = vld [vmem:[%s1826 + $0x10] sm:$0xff]
      %v1830 = vld [vmem:[%s1826 + $0x18] sm:$0xff]
      %v1831 = vld [vmem:[%s1826 + $0x20] sm:$0xff]
      %v1832 = vld [vmem:[%s1826 + $0x28] sm:$0xff]
      %v1833 = vld [vmem:[%s1826 + $0x30] sm:$0xff]
      %v1834 = vld [vmem:[%s1826 + $0x38] sm:$0xff]
      %v1835 = vld [vmem:[%s1826 + $0x40] sm:$0xff]
      %1836 = vmatprep.subr.mxu0 0.0
      %1837 = vmatpush1.msra.mxu0 0.0
      %1838 = vmatprep.subr.mxu0 0.0
      %1839 = vmatpush1.msra.mxu0 0.0
      %1840 = vmatprep.subr.mxu0 0.0
      %1841 = vmatpush1.msra.mxu0 0.0
      %1842 = vmatprep.subr.mxu0 0.0
      %1843 = vmatpush1.msra.mxu0 0.0
      %1844 = vmatprep.subr.mxu0 0.0
      %1845 = vmatpush1.msra.mxu0 0.0
      %1846 = vmatprep.subr.mxu0 0.0
      %1847 = vmatpush1.msra.mxu0 0.0
      %1848 = vmatprep.subr.mxu0 0.0
      %1849 = vmatpush1.msra.mxu0 0.0
      %1850 = vmatprep.subr.mxu0 0.0
      %1851 = vmatpush1.msra.mxu0 %v1835
      %1852 = vmatprep.subr.mxu0 0.0
      %1853 = vmatpush1.msra.mxu0 %v1834
      %1854 = vmatprep.subr.mxu0 0.0
      %1855 = vmatpush1.msra.mxu0 %v1833
      %1856 = vmatprep.subr.mxu0 0.0
      %1857 = vmatpush1.msra.mxu0 %v1832
      %1858 = vmatprep.subr.mxu0 0.0
      %1859 = vmatpush1.msra.mxu0 %v1831
      %1860 = vmatprep.subr.mxu0 0.0
      %1861 = vmatpush1.msra.mxu0 %v1830
      %1862 = vmatprep.subr.mxu0 0.0
      %1863 = vmatpush1.msra.mxu0 %v1829
      %1864 = vmatprep.subr.mxu0 0.0
      %1865 = vmatpush1.msra.mxu0 %v1828
      %1866 = vmatprep.subr.mxu0 0.0
      %1867 = vmatpush1.msra.mxu0 %v1827
      %1868 = vmatprep.subr.mxu0 0.0
      %1869 = vmatpush2.msra.mxu0 0.0
      %1870 = vmatprep.subr.mxu0 0.0
      %1871 = vmatpush2.msra.mxu0 0.0
      %1872 = vmatprep.subr.mxu0 0.0
      %1873 = vmatpush2.msra.mxu0 0.0
      %1874 = vmatprep.subr.mxu0 0.0
      %1875 = vmatpush2.msra.mxu0 0.0
      %1876 = vmatprep.subr.mxu0 0.0
      %1877 = vmatpush2.msra.mxu0 0.0
      %1878 = vmatprep.subr.mxu0 0.0
      %1879 = vmatpush2.msra.mxu0 0.0
      %1880 = vmatprep.subr.mxu0 0.0
      %1881 = vmatpush2.msra.mxu0 0.0
      %1882 = vmatprep.subr.mxu0 0.0
      %1883 = vmatpush2.msra.mxu0 0.0
      %1884 = vmatprep.subr.mxu0 0.0
      %1885 = vmatpush2.msra.mxu0 0.0
      %1886 = vmatprep.subr.mxu0 0.0
      %1887 = vmatpush2.msra.mxu0 0.0
      %1888 = vmatprep.subr.mxu0 0.0
      %1889 = vmatpush2.msra.mxu0 0.0
      %1890 = vmatprep.subr.mxu0 0.0
      %1891 = vmatpush2.msra.mxu0 0.0
      %1892 = vmatprep.subr.mxu0 0.0
      %1893 = vmatpush2.msra.mxu0 0.0
      %1894 = vmatprep.subr.mxu0 0.0
      %1895 = vmatpush2.msra.mxu0 0.0
      %1896 = vmatprep.subr.mxu0 0.0
      %1897 = vmatpush2.msra.mxu0 0.0
      %1898 = vmatprep.subr.mxu0 0.0
      %1899 = vmatpush2.msra.mxu0 0.0
      %1900 = vmatprep.mubr.f32.mxu0 0.0
      %1901 = vmatmul.mubr.f32.gmra.mxu0 %v211
      %v1902 = vpop.f32.mrf.mxu0
      %v1903 = vadd.f32 0.0, %v1902
      %v1904 = vpop.f32.mrf.mxu0
      %1905 = vmatprep.mubr.f32.mxu0 0.0
      %1906 = vmatmul.mubr.f32.gmra.mxu0 %v214
      %v1907 = vpop.f32.mrf.mxu0
      %v1908 = vadd.f32 0.0, %v1907
      %v1909 = vpop.f32.mrf.mxu0
      %1910 = vdwg.mxu0
      %s1911 = scalar_lea.vmem %s1, 504
      %v1912 = vld [vmem:[%s1911] sm:$0xff]
      %v1913 = vld [vmem:[%s1911 + $0x8] sm:$0xff]
      %v1914 = vld [vmem:[%s1911 + $0x10] sm:$0xff]
      %v1915 = vld [vmem:[%s1911 + $0x18] sm:$0xff]
      %v1916 = vld [vmem:[%s1911 + $0x20] sm:$0xff]
      %v1917 = vld [vmem:[%s1911 + $0x28] sm:$0xff]
      %v1918 = vld [vmem:[%s1911 + $0x30] sm:$0xff]
      %v1919 = vld [vmem:[%s1911 + $0x38] sm:$0xff]
      %v1920 = vld [vmem:[%s1911 + $0x40] sm:$0xff]
      %1921 = vmatprep.subr.mxu0 0.0
      %1922 = vmatpush1.msra.mxu0 0.0
      %1923 = vmatprep.subr.mxu0 0.0
      %1924 = vmatpush1.msra.mxu0 0.0
      %1925 = vmatprep.subr.mxu0 0.0
      %1926 = vmatpush1.msra.mxu0 0.0
      %1927 = vmatprep.subr.mxu0 0.0
      %1928 = vmatpush1.msra.mxu0 0.0
      %1929 = vmatprep.subr.mxu0 0.0
      %1930 = vmatpush1.msra.mxu0 0.0
      %1931 = vmatprep.subr.mxu0 0.0
      %1932 = vmatpush1.msra.mxu0 0.0
      %1933 = vmatprep.subr.mxu0 0.0
      %1934 = vmatpush1.msra.mxu0 0.0
      %1935 = vmatprep.subr.mxu0 0.0
      %1936 = vmatpush1.msra.mxu0 %v1920
      %1937 = vmatprep.subr.mxu0 0.0
      %1938 = vmatpush1.msra.mxu0 %v1919
      %1939 = vmatprep.subr.mxu0 0.0
      %1940 = vmatpush1.msra.mxu0 %v1918
      %1941 = vmatprep.subr.mxu0 0.0
      %1942 = vmatpush1.msra.mxu0 %v1917
      %1943 = vmatprep.subr.mxu0 0.0
      %1944 = vmatpush1.msra.mxu0 %v1916
      %1945 = vmatprep.subr.mxu0 0.0
      %1946 = vmatpush1.msra.mxu0 %v1915
      %1947 = vmatprep.subr.mxu0 0.0
      %1948 = vmatpush1.msra.mxu0 %v1914
      %1949 = vmatprep.subr.mxu0 0.0
      %1950 = vmatpush1.msra.mxu0 %v1913
      %1951 = vmatprep.subr.mxu0 0.0
      %1952 = vmatpush1.msra.mxu0 %v1912
      %1953 = vmatprep.subr.mxu0 0.0
      %1954 = vmatpush2.msra.mxu0 0.0
      %1955 = vmatprep.subr.mxu0 0.0
      %1956 = vmatpush2.msra.mxu0 0.0
      %1957 = vmatprep.subr.mxu0 0.0
      %1958 = vmatpush2.msra.mxu0 0.0
      %1959 = vmatprep.subr.mxu0 0.0
      %1960 = vmatpush2.msra.mxu0 0.0
      %1961 = vmatprep.subr.mxu0 0.0
      %1962 = vmatpush2.msra.mxu0 0.0
      %1963 = vmatprep.subr.mxu0 0.0
      %1964 = vmatpush2.msra.mxu0 0.0
      %1965 = vmatprep.subr.mxu0 0.0
      %1966 = vmatpush2.msra.mxu0 0.0
      %1967 = vmatprep.subr.mxu0 0.0
      %1968 = vmatpush2.msra.mxu0 0.0
      %1969 = vmatprep.subr.mxu0 0.0
      %1970 = vmatpush2.msra.mxu0 0.0
      %1971 = vmatprep.subr.mxu0 0.0
      %1972 = vmatpush2.msra.mxu0 0.0
      %1973 = vmatprep.subr.mxu0 0.0
      %1974 = vmatpush2.msra.mxu0 0.0
      %1975 = vmatprep.subr.mxu0 0.0
      %1976 = vmatpush2.msra.mxu0 0.0
      %1977 = vmatprep.subr.mxu0 0.0
      %1978 = vmatpush2.msra.mxu0 0.0
      %1979 = vmatprep.subr.mxu0 0.0
      %1980 = vmatpush2.msra.mxu0 0.0
      %1981 = vmatprep.subr.mxu0 0.0
      %1982 = vmatpush2.msra.mxu0 0.0
      %1983 = vmatprep.subr.mxu0 0.0
      %1984 = vmatpush2.msra.mxu0 0.0
      %1985 = vmatprep.mubr.f32.mxu0 0.0
      %1986 = vmatmul.mubr.f32.gmra.mxu0 %v211
      %v1987 = vpop.f32.mrf.mxu0
      %v1988 = vadd.f32 0.0, %v1987
      %v1989 = vpop.f32.mrf.mxu0
      %1990 = vmatprep.mubr.f32.mxu0 0.0
      %1991 = vmatmul.mubr.f32.gmra.mxu0 %v214
      %v1992 = vpop.f32.mrf.mxu0
      %v1993 = vadd.f32 0.0, %v1992
      %v1994 = vpop.f32.mrf.mxu0
      %1995 = vdwg.mxu0
      %s1996 = scalar_lea.vmem %s1, 792
      %v1997 = vld [vmem:[%s1996] sm:$0xff]
      %v1998 = vld [vmem:[%s1996 + $0x8] sm:$0xff]
      %v1999 = vld [vmem:[%s1996 + $0x10] sm:$0xff]
      %v2000 = vld [vmem:[%s1996 + $0x18] sm:$0xff]
      %v2001 = vld [vmem:[%s1996 + $0x20] sm:$0xff]
      %v2002 = vld [vmem:[%s1996 + $0x28] sm:$0xff]
      %v2003 = vld [vmem:[%s1996 + $0x30] sm:$0xff]
      %v2004 = vld [vmem:[%s1996 + $0x38] sm:$0xff]
      %v2005 = vld [vmem:[%s1996 + $0x40] sm:$0xff]
      %2006 = vmatprep.subr.mxu0 0.0
      %2007 = vmatpush1.msra.mxu0 0.0
      %2008 = vmatprep.subr.mxu0 0.0
      %2009 = vmatpush1.msra.mxu0 0.0
      %2010 = vmatprep.subr.mxu0 0.0
      %2011 = vmatpush1.msra.mxu0 0.0
      %2012 = vmatprep.subr.mxu0 0.0
      %2013 = vmatpush1.msra.mxu0 0.0
      %2014 = vmatprep.subr.mxu0 0.0
      %2015 = vmatpush1.msra.mxu0 0.0
      %2016 = vmatprep.subr.mxu0 0.0
      %2017 = vmatpush1.msra.mxu0 0.0
      %2018 = vmatprep.subr.mxu0 0.0
      %2019 = vmatpush1.msra.mxu0 0.0
      %2020 = vmatprep.subr.mxu0 0.0
      %2021 = vmatpush1.msra.mxu0 %v2005
      %2022 = vmatprep.subr.mxu0 0.0
      %2023 = vmatpush1.msra.mxu0 %v2004
      %2024 = vmatprep.subr.mxu0 0.0
      %2025 = vmatpush1.msra.mxu0 %v2003
      %2026 = vmatprep.subr.mxu0 0.0
      %2027 = vmatpush1.msra.mxu0 %v2002
      %2028 = vmatprep.subr.mxu0 0.0
      %2029 = vmatpush1.msra.mxu0 %v2001
      %2030 = vmatprep.subr.mxu0 0.0
      %2031 = vmatpush1.msra.mxu0 %v2000
      %2032 = vmatprep.subr.mxu0 0.0
      %2033 = vmatpush1.msra.mxu0 %v1999
      %2034 = vmatprep.subr.mxu0 0.0
      %2035 = vmatpush1.msra.mxu0 %v1998
      %2036 = vmatprep.subr.mxu0 0.0
      %2037 = vmatpush1.msra.mxu0 %v1997
      %2038 = vmatprep.subr.mxu0 0.0
      %2039 = vmatpush2.msra.mxu0 0.0
      %2040 = vmatprep.subr.mxu0 0.0
      %2041 = vmatpush2.msra.mxu0 0.0
      %2042 = vmatprep.subr.mxu0 0.0
      %2043 = vmatpush2.msra.mxu0 0.0
      %2044 = vmatprep.subr.mxu0 0.0
      %2045 = vmatpush2.msra.mxu0 0.0
      %2046 = vmatprep.subr.mxu0 0.0
      %2047 = vmatpush2.msra.mxu0 0.0
      %2048 = vmatprep.subr.mxu0 0.0
      %2049 = vmatpush2.msra.mxu0 0.0
      %2050 = vmatprep.subr.mxu0 0.0
      %2051 = vmatpush2.msra.mxu0 0.0
      %2052 = vmatprep.subr.mxu0 0.0
      %2053 = vmatpush2.msra.mxu0 0.0
      %2054 = vmatprep.subr.mxu0 0.0
      %2055 = vmatpush2.msra.mxu0 0.0
      %2056 = vmatprep.subr.mxu0 0.0
      %2057 = vmatpush2.msra.mxu0 0.0
      %2058 = vmatprep.subr.mxu0 0.0
      %2059 = vmatpush2.msra.mxu0 0.0
      %2060 = vmatprep.subr.mxu0 0.0
      %2061 = vmatpush2.msra.mxu0 0.0
      %2062 = vmatprep.subr.mxu0 0.0
      %2063 = vmatpush2.msra.mxu0 0.0
      %2064 = vmatprep.subr.mxu0 0.0
      %2065 = vmatpush2.msra.mxu0 0.0
      %2066 = vmatprep.subr.mxu0 0.0
      %2067 = vmatpush2.msra.mxu0 0.0
      %2068 = vmatprep.subr.mxu0 0.0
      %2069 = vmatpush2.msra.mxu0 0.0
      %2070 = vmatprep.mubr.f32.mxu0 0.0
      %2071 = vmatmul.mubr.f32.gmra.mxu0 %v211
      %v2072 = vpop.f32.mrf.mxu0
      %v2073 = vadd.f32 0.0, %v2072
      %v2074 = vpop.f32.mrf.mxu0
      %2075 = vmatprep.mubr.f32.mxu0 0.0
      %2076 = vmatmul.mubr.f32.gmra.mxu0 %v214
      %v2077 = vpop.f32.mrf.mxu0
      %v2078 = vadd.f32 0.0, %v2077
      %v2079 = vpop.f32.mrf.mxu0
      %2080 = vdwg.mxu0
      %v2082 = vsel %vm461, %v1903, 0
      %v2085 = vsel %vm461, %v1908, 0
      %v2088 = vsel %vm461, %v1988, 0
      %v2091 = vsel %vm461, %v1993, 0
      %2093 = vmatprep.subr.mxu0 0.0
      %2094 = vmatpush1.xpose.msra.mxu0 0.0
      %2095 = vmatprep.subr.mxu0 0.0
      %2096 = vmatpush1.xpose.msra.mxu0 0.0
      %2097 = vmatprep.subr.mxu0 0.0
      %2098 = vmatpush1.xpose.msra.mxu0 0.0
      %2099 = vmatprep.subr.mxu0 0.0
      %2100 = vmatpush1.xpose.msra.mxu0 0.0
      %2101 = vmatprep.subr.mxu0 0.0
      %2102 = vmatpush1.xpose.msra.mxu0 0.0
      %2103 = vmatprep.subr.mxu0 0.0
      %2104 = vmatpush1.xpose.msra.mxu0 0.0
      %2105 = vmatprep.subr.mxu0 0.0
      %2106 = vmatpush1.xpose.msra.mxu0 0.0
      %2107 = vmatprep.subr.mxu0 0.0
      %2108 = vmatpush1.xpose.msra.mxu0 0.0
      %2109 = vmatprep.subr.mxu0 0.0
      %2110 = vmatpush1.xpose.msra.mxu0 0.0
      %2111 = vmatprep.subr.mxu0 0.0
      %2112 = vmatpush1.xpose.msra.mxu0 0.0
      %2113 = vmatprep.subr.mxu0 0.0
      %2114 = vmatpush1.xpose.msra.mxu0 0.0
      %2115 = vmatprep.subr.mxu0 0.0
      %2116 = vmatpush1.xpose.msra.mxu0 0.0
      %2117 = vmatprep.subr.mxu0 0.0
      %2118 = vmatpush1.xpose.msra.mxu0 0.0
      %2119 = vmatprep.subr.mxu0 0.0
      %2120 = vmatpush1.xpose.msra.mxu0 0.0
      %2121 = vmatprep.subr.mxu0 0.0
      %2122 = vmatpush1.xpose.msra.mxu0 %v2091
      %2123 = vmatprep.subr.mxu0 0.0
      %2124 = vmatpush1.xpose.msra.mxu0 %v2088
      %2125 = vmatprep.subr.mxu0 0.0
      %2126 = vmatpush2.xpose.msra.mxu0 0.0
      %2127 = vmatprep.subr.mxu0 0.0
      %2128 = vmatpush2.xpose.msra.mxu0 0.0
      %2129 = vmatprep.subr.mxu0 0.0
      %2130 = vmatpush2.xpose.msra.mxu0 0.0
      %2131 = vmatprep.subr.mxu0 0.0
      %2132 = vmatpush2.xpose.msra.mxu0 0.0
      %2133 = vmatprep.subr.mxu0 0.0
      %2134 = vmatpush2.xpose.msra.mxu0 0.0
      %2135 = vmatprep.subr.mxu0 0.0
      %2136 = vmatpush2.xpose.msra.mxu0 0.0
      %2137 = vmatprep.subr.mxu0 0.0
      %2138 = vmatpush2.xpose.msra.mxu0 0.0
      %2139 = vmatprep.subr.mxu0 0.0
      %2140 = vmatpush2.xpose.msra.mxu0 0.0
      %2141 = vmatprep.subr.mxu0 0.0
      %2142 = vmatpush2.xpose.msra.mxu0 0.0
      %2143 = vmatprep.subr.mxu0 0.0
      %2144 = vmatpush2.xpose.msra.mxu0 0.0
      %2145 = vmatprep.subr.mxu0 0.0
      %2146 = vmatpush2.xpose.msra.mxu0 0.0
      %2147 = vmatprep.subr.mxu0 0.0
      %2148 = vmatpush2.xpose.msra.mxu0 0.0
      %2149 = vmatprep.subr.mxu0 0.0
      %2150 = vmatpush2.xpose.msra.mxu0 0.0
      %2151 = vmatprep.subr.mxu0 0.0
      %2152 = vmatpush2.xpose.msra.mxu0 0.0
      %2153 = vmatprep.subr.mxu0 0.0
      %2154 = vmatpush2.xpose.msra.mxu0 0.0
      %2155 = vmatprep.subr.mxu0 0.0
      %2156 = vmatpush2.xpose.msra.mxu0 0.0
      %2157 = vmatprep.mubr.f32.mxu0 0.0
      %2158 = vmatmul.mubr.f32.gmra.mxu0 %v2082
      %v2159 = vpop.f32.mrf.mxu0
      %v2160 = vadd.f32 0.0, %v2159
      %v2161 = vpop.f32.mrf.mxu0
      %2162 = vmatprep.mubr.f32.mxu0 0.0
      %2163 = vmatmul.mubr.f32.gmra.mxu0 %v2085
      %v2164 = vpop.f32.mrf.mxu0
      %v2165 = vadd.f32 0.0, %v2164
      %v2166 = vpop.f32.mrf.mxu0
      %2167 = vdwg.mxu0
      %v2168 = vmul.f32 %v2160, 0.23570226
      %v2169 = vmul.f32 %v2165, 0.23570226
      %v2170 = vsel %vm551, %v2168, -inf
      %2171 = vmax.xlane.f32.xlu0 %v2170
      %v2172 = vpop.xlane.xlu0 %2171
      %v2173 = vsel %vm555, %v2169, -inf
      %2174 = vmax.xlane.f32.xlu0 %v2173
      %v2175 = vpop.xlane.xlu0 %2174
      %v2176 = vsub.f32 %v2168, %v2172
      %v2177 = vsub.f32 %v2169, %v2175
      %v2178 = vmul.f32 %v2176, 1.442695
      %v2179 = vpow.pop %v2178
      %v2180 = vmul.f32 %v2177, 1.442695
      %v2181 = vpow.pop %v2180
      %v2182 = vsel %vm551, %v2179, 0.0
      %2183 = vadd.xlane.f32.xlu0 %v2182
      %v2184 = vpop.xlane.xlu0 %2183
      %v2185 = vsel %vm555, %v2181, 0.0
      %2186 = vadd.xlane.f32.xlu0 %v2185
      %v2187 = vpop.xlane.xlu0 %2186
      %v2188 = vrcp.pop %v2184
      %v2189 = vrcp.pop %v2187
      %v2190 = vmul.f32 %v2179, %v2188
      %v2191 = vmul.f32 %v2181, %v2189
      %v2193 = vsel %vm551, %v2190, 0
      %v2196 = vsel %vm551, %v2191, 0
      %v2199 = vsel %vm581, %v2078, 0
      %2201 = vmatprep.subr.mxu0 0.0
      %2202 = vmatpush1.msra.mxu0 0.0
      %2203 = vmatprep.subr.mxu0 0.0
      %2204 = vmatpush1.msra.mxu0 0.0
      %2205 = vmatprep.subr.mxu0 0.0
      %2206 = vmatpush1.msra.mxu0 0.0
      %2207 = vmatprep.subr.mxu0 0.0
      %2208 = vmatpush1.msra.mxu0 0.0
      %2209 = vmatprep.subr.mxu0 0.0
      %2210 = vmatpush1.msra.mxu0 0.0
      %2211 = vmatprep.subr.mxu0 0.0
      %2212 = vmatpush1.msra.mxu0 0.0
      %2213 = vmatprep.subr.mxu0 0.0
      %2214 = vmatpush1.msra.mxu0 0.0
      %2215 = vmatprep.subr.mxu0 0.0
      %2216 = vmatpush1.msra.mxu0 0.0
      %2217 = vmatprep.subr.mxu0 0.0
      %2218 = vmatpush1.msra.mxu0 0.0
      %2219 = vmatprep.subr.mxu0 0.0
      %2220 = vmatpush1.msra.mxu0 0.0
      %2221 = vmatprep.subr.mxu0 0.0
      %2222 = vmatpush1.msra.mxu0 0.0
      %2223 = vmatprep.subr.mxu0 0.0
      %2224 = vmatpush1.msra.mxu0 0.0
      %2225 = vmatprep.subr.mxu0 0.0
      %2226 = vmatpush1.msra.mxu0 0.0
      %2227 = vmatprep.subr.mxu0 0.0
      %2228 = vmatpush1.msra.mxu0 0.0
      %2229 = vmatprep.subr.mxu0 0.0
      %2230 = vmatpush1.msra.mxu0 %v2199
      %2231 = vmatprep.subr.mxu0 0.0
      %2232 = vmatpush1.msra.mxu0 %v2073
      %2233 = vmatprep.subr.mxu0 0.0
      %2234 = vmatpush2.msra.mxu0 0.0
      %2235 = vmatprep.subr.mxu0 0.0
      %2236 = vmatpush2.msra.mxu0 0.0
      %2237 = vmatprep.subr.mxu0 0.0
      %2238 = vmatpush2.msra.mxu0 0.0
      %2239 = vmatprep.subr.mxu0 0.0
      %2240 = vmatpush2.msra.mxu0 0.0
      %2241 = vmatprep.subr.mxu0 0.0
      %2242 = vmatpush2.msra.mxu0 0.0
      %2243 = vmatprep.subr.mxu0 0.0
      %2244 = vmatpush2.msra.mxu0 0.0
      %2245 = vmatprep.subr.mxu0 0.0
      %2246 = vmatpush2.msra.mxu0 0.0
      %2247 = vmatprep.subr.mxu0 0.0
      %2248 = vmatpush2.msra.mxu0 0.0
      %2249 = vmatprep.subr.mxu0 0.0
      %2250 = vmatpush2.msra.mxu0 0.0
      %2251 = vmatprep.subr.mxu0 0.0
      %2252 = vmatpush2.msra.mxu0 0.0
      %2253 = vmatprep.subr.mxu0 0.0
      %2254 = vmatpush2.msra.mxu0 0.0
      %2255 = vmatprep.subr.mxu0 0.0
      %2256 = vmatpush2.msra.mxu0 0.0
      %2257 = vmatprep.subr.mxu0 0.0
      %2258 = vmatpush2.msra.mxu0 0.0
      %2259 = vmatprep.subr.mxu0 0.0
      %2260 = vmatpush2.msra.mxu0 0.0
      %2261 = vmatprep.subr.mxu0 0.0
      %2262 = vmatpush2.msra.mxu0 0.0
      %2263 = vmatprep.subr.mxu0 0.0
      %2264 = vmatpush2.msra.mxu0 0.0
      %2265 = vmatprep.mubr.f32.mxu0 0.0
      %2266 = vmatmul.mubr.f32.gmra.mxu0 %v2193
      %v2267 = vpop.f32.mrf.mxu0
      %v2268 = vadd.f32 0.0, %v2267
      %v2269 = vpop.f32.mrf.mxu0
      %2270 = vmatprep.mubr.f32.mxu0 0.0
      %2271 = vmatmul.mubr.f32.gmra.mxu0 %v2196
      %v2272 = vpop.f32.mrf.mxu0
      %v2273 = vadd.f32 0.0, %v2272
      %v2274 = vpop.f32.mrf.mxu0
      %2275 = vdwg.mxu0
      %s2276 = scalar_lea.vmem %s2, 72
      %v2277 = vld [vmem:[%s2276] sm:$0xff]
      %v2278 = vld [vmem:[%s2276 + $0x8] sm:$0xff]
      %v2279 = vld [vmem:[%s2276 + $0x10] sm:$0x3]
      %v2281 = vsel %vm461, %v2268, 0
      %v2284 = vsel %vm461, %v2273, 0
      %v2287 = vsel %vm1123, %v2279, 0
      %2289 = vmatprep.subr.mxu0 0.0
      %2290 = vmatpush1.msra.mxu0 0.0
      %2291 = vmatprep.subr.mxu0 0.0
      %2292 = vmatpush1.msra.mxu0 0.0
      %2293 = vmatprep.subr.mxu0 0.0
      %2294 = vmatpush1.msra.mxu0 0.0
      %2295 = vmatprep.subr.mxu0 0.0
      %2296 = vmatpush1.msra.mxu0 0.0
      %2297 = vmatprep.subr.mxu0 0.0
      %2298 = vmatpush1.msra.mxu0 0.0
      %2299 = vmatprep.subr.mxu0 0.0
      %2300 = vmatpush1.msra.mxu0 0.0
      %2301 = vmatprep.subr.mxu0 0.0
      %2302 = vmatpush1.msra.mxu0 0.0
      %2303 = vmatprep.subr.mxu0 0.0
      %2304 = vmatpush1.msra.mxu0 0.0
      %2305 = vmatprep.subr.mxu0 0.0
      %2306 = vmatpush1.msra.mxu0 0.0
      %2307 = vmatprep.subr.mxu0 0.0
      %2308 = vmatpush1.msra.mxu0 0.0
      %2309 = vmatprep.subr.mxu0 0.0
      %2310 = vmatpush1.msra.mxu0 0.0
      %2311 = vmatprep.subr.mxu0 0.0
      %2312 = vmatpush1.msra.mxu0 0.0
      %2313 = vmatprep.subr.mxu0 0.0
      %2314 = vmatpush1.msra.mxu0 0.0
      %2315 = vmatprep.subr.mxu0 0.0
      %2316 = vmatpush1.msra.mxu0 %v2287
      %2317 = vmatprep.subr.mxu0 0.0
      %2318 = vmatpush1.msra.mxu0 %v2278
      %2319 = vmatprep.subr.mxu0 0.0
      %2320 = vmatpush1.msra.mxu0 %v2277
      %2321 = vmatprep.subr.mxu0 0.0
      %2322 = vmatpush2.msra.mxu0 0.0
      %2323 = vmatprep.subr.mxu0 0.0
      %2324 = vmatpush2.msra.mxu0 0.0
      %2325 = vmatprep.subr.mxu0 0.0
      %2326 = vmatpush2.msra.mxu0 0.0
      %2327 = vmatprep.subr.mxu0 0.0
      %2328 = vmatpush2.msra.mxu0 0.0
      %2329 = vmatprep.subr.mxu0 0.0
      %2330 = vmatpush2.msra.mxu0 0.0
      %2331 = vmatprep.subr.mxu0 0.0
      %2332 = vmatpush2.msra.mxu0 0.0
      %2333 = vmatprep.subr.mxu0 0.0
      %2334 = vmatpush2.msra.mxu0 0.0
      %2335 = vmatprep.subr.mxu0 0.0
      %2336 = vmatpush2.msra.mxu0 0.0
      %2337 = vmatprep.subr.mxu0 0.0
      %2338 = vmatpush2.msra.mxu0 0.0
      %2339 = vmatprep.subr.mxu0 0.0
      %2340 = vmatpush2.msra.mxu0 0.0
      %2341 = vmatprep.subr.mxu0 0.0
      %2342 = vmatpush2.msra.mxu0 0.0
      %2343 = vmatprep.subr.mxu0 0.0
      %2344 = vmatpush2.msra.mxu0 0.0
      %2345 = vmatprep.subr.mxu0 0.0
      %2346 = vmatpush2.msra.mxu0 0.0
      %2347 = vmatprep.subr.mxu0 0.0
      %2348 = vmatpush2.msra.mxu0 0.0
      %2349 = vmatprep.subr.mxu0 0.0
      %2350 = vmatpush2.msra.mxu0 0.0
      %2351 = vmatprep.subr.mxu0 0.0
      %2352 = vmatpush2.msra.mxu0 0.0
      %2353 = vmatprep.mubr.f32.mxu0 0.0
      %2354 = vmatmul.mubr.f32.gmra.mxu0 %v2281
      %v2355 = vpop.f32.mrf.mxu0
      %v2356 = vadd.f32 0.0, %v2355
      %v2357 = vpop.f32.mrf.mxu0
      %2358 = vmatprep.mubr.f32.mxu0 0.0
      %2359 = vmatmul.mubr.f32.gmra.mxu0 %v2284
      %v2360 = vpop.f32.mrf.mxu0
      %v2361 = vadd.f32 0.0, %v2360
      %v2362 = vpop.f32.mrf.mxu0
      %2363 = vdwg.mxu0
      %v2364 = vadd.f32 %v1824, %v2356
      %v2365 = vadd.f32 %v1825, %v2361
      %v2366 = vld [vmem:[%s3] sm:$0x1]
      %v2368 = vlaneseq
      %v2369 = vshrl.u32 %v2368, 7
      %v2370 = vsub.s32 0, %v2369
      %v2371 = vrot.slane %v2366, %v2370
      %v2373 = vadd.f32 %v2364, %v2371
      %v2374 = vadd.f32 %v2365, %v2371
      %2375 = vst.msk [vmem:[%s197] sm:$0xff] %vm209, %v2373
      %vm2376 = vcmask 581632
      %2377 = vst.msk [vmem:[%s197 + $0x8] sm:$0x1] %vm2376, %v2374
      %p2378 = scmp.lt.s32.totalorder %s15, 1
      %s2379 = scalar_select %p2378, %s15, 1
      %s2380 = smul.addr %s2379, 2
      %s2381 = smul.addr %s2380, 8
      %s2382 = scalar_lea.vmem %s4, %s2381
      // Predicated region
      $region37: #{attention_forward_pallas.1} parent=35 // pred_check
        %p2383 = pneg %p122
      $region38: #{attention_forward_pallas.1} parent=35 // pred_check_branch
        %2385 = sbr.rel (%p2383) target = $region40
      $region39: #{attention_forward_pallas.1} parent=35 // pred_region
        _
      $region40: #{attention_forward_pallas.1} parent=35 // pred_fallthru
        _
    $region36: #{attention_forward_pallas.1} parent=5 // pred_fallthru
      _
    %p2386 = scmp.le.s32.totalorder 2, %s10
    // Predicated region
    $region41: #{attention_forward_pallas.1} parent=5 // pred_check
      %p2387 = pneg %p2386
    $region42: #{attention_forward_pallas.1} parent=5 // pred_check_branch
      %2389 = sbr.rel (%p2387) target = $region44
    $region43: #{attention_forward_pallas.1} parent=5 // pred_region
      %s2390 = ssub.s32 %s10, 2
      // Predicated region
      $region45: #{attention_forward_pallas.1} parent=43 // pred_check
        %p2391 = pneg %p128
      $region46: #{attention_forward_pallas.1} parent=43 // pred_check_branch
        %2393 = sbr.rel (%p2391) target = $region48
      $region47: #{attention_forward_pallas.1} parent=43 // pred_region
        %p2394 = scmp.lt.s32.totalorder %s16, 1
        %s2395 = scalar_select %p2394, %s16, 1
        %s2396 = smul.addr %s2395, 2
        %s2397 = smul.addr %s2396, 8
        %s2398 = scalar_lea.vmem %s4, %s2397
      $region48: #{attention_forward_pallas.1} parent=43 // pred_fallthru
        _
    $region44: #{attention_forward_pallas.1} parent=5 // pred_fallthru
      _
  $region6: #{attention_forward_pallas.1} parent=0 // loop_footer
    %s14 = sadd.s32 1, %s10
  $region7: #{attention_forward_pallas.1} parent=0 // loop_footer_branch
    %9 = sbr.rel target = $region3
  $region8: #{attention_forward_pallas.1} parent=0 // loop_exit
    _

</llo_original>
